<compile_context>
chip_gen: v7x
topology: tpu7x:2x2x1
jax: 0.10.0
libtpu: 0.0.40
codegen_flags: <defaults>
</compile_context>

<pallas_src>
import jax
import jax.numpy as jnp
from jax.experimental import pallas as pl
from jax.experimental.pallas import tpu as pltpu

HIDDEN_SIZE = 50
INPUT_SIZE = 3
NUM_LAYERS = 1          # single layer only

GATE_PAD = 128          # lanes per gate (H=50 padded to 128)
BATCH_TILE = 8          # sublane-aligned batch tile


def lstm_fc_kernel(x_ref, wih_ref, whh_ref, b_ref, fcw_ref, fcb_ref, out_ref):
    # x_ref:   (T*BT, I)    time-major within the batch tile: row = t*BT + b
    # wih_ref: (I, 4*GP)    W_ih^T, each gate in its own 128-lane group
    # whh_ref: (GP, 4*GP)   W_hh^T, rows >= H and per-gate lanes >= H are 0
    # b_ref:   (1, 4*GP)    b_ih + b_hh, padded
    # fcw_ref: (1, GP)      fc.weight, lanes >= H are 0
    # fcb_ref: (1, 1)       fc.bias
    # out_ref: (BT, GP)     fc output broadcast across lanes
    BT, GP = out_ref.shape
    T = x_ref.shape[0] // BT

    # Hoisted input projection: one matmul covering every timestep.
    x_proj = (
        jnp.dot(x_ref[...], wih_ref[...], preferred_element_type=jnp.float32)
        + b_ref[...]
    )                                                       # (T*BT, 4*GP)

    whh = whh_ref[...]
    h = jnp.zeros((BT, GP), jnp.float32)
    c = jnp.zeros((BT, GP), jnp.float32)

    # Fully unrolled recurrence: a single MXU matmul per step on the serial
    # dependency chain; gate slices are 128-lane aligned.
    for t in range(T):
        gates = x_proj[t * BT:(t + 1) * BT, :] + jnp.dot(
            h, whh, preferred_element_type=jnp.float32)     # (BT, 4*GP)
        i_g = jax.nn.sigmoid(gates[:, 0 * GP:1 * GP])
        f_g = jax.nn.sigmoid(gates[:, 1 * GP:2 * GP])
        g_g = jnp.tanh(gates[:, 2 * GP:3 * GP])
        o_g = jax.nn.sigmoid(gates[:, 3 * GP:4 * GP])
        c = f_g * c + i_g * g_g
        h = o_g * jnp.tanh(c)
        # Padded lanes stay exactly 0: their gate pre-activations are 0, so
        # h_pad = sigmoid(0) * tanh(sigmoid(0)*0 + sigmoid(0)*tanh(0)) = 0.

    # FC(H -> 1) as VPU multiply + lane reduction; lane-dense output block.
    s = jnp.sum(h * fcw_ref[...], axis=-1, keepdims=True) + fcb_ref[...]
    out_ref[...] = jnp.broadcast_to(s, (BT, GP))


def prepare_params(params):
    """One-time padding / transposition of PyTorch-layout LSTM parameters."""
    H, GP = HIDDEN_SIZE, GATE_PAD

    def pad_gate_cols(w_t):
        # w_t: (K, 4H) -> (K, 4*GP), each gate in its own 128-lane group.
        K = w_t.shape[0]
        w4 = w_t.reshape(K, 4, H)
        w4 = jnp.pad(w4, ((0, 0), (0, 0), (0, GP - H)))
        return w4.reshape(K, 4 * GP)

    wih_p = pad_gate_cols(jnp.transpose(params["w_ih"]))            # (I, 4*GP)
    whh_p = pad_gate_cols(jnp.transpose(params["w_hh"]))            # (H, 4*GP)
    whh_p = jnp.pad(whh_p, ((0, GP - H), (0, 0)))                   # (GP, 4*GP)
    b_p = pad_gate_cols((params["b_ih"] + params["b_hh"])[None, :])  # (1, 4*GP)
    fcw_p = jnp.pad(params["fc_w"], ((0, 0), (0, GP - H)))          # (1, GP)
    fcb_p = params["fc_b"].reshape(1, 1)                            # (1, 1)
    return {"wih": wih_p, "whh": whh_p, "b": b_p, "fcw": fcw_p, "fcb": fcb_p}


@jax.jit
def lstm_model_forward(x, prepped):
    """x: (B, T, I) float32 -> (B, 1) float32."""
    B, T, I = x.shape
    GP, BT = GATE_PAD, BATCH_TILE
    B_pad = ((B + BT - 1) // BT) * BT
    n_b = B_pad // BT

    # (B, T, I) -> (n_b, BT, T, I) -> (n_b, T, BT, I) -> (n_b*T*BT, I)
    x_p = jnp.pad(x, ((0, B_pad - B), (0, 0), (0, 0)))
    x_flat = (
        x_p.reshape(n_b, BT, T, I).transpose(0, 2, 1, 3).reshape(n_b * T * BT, I)
    )

    out = pl.pallas_call(
        lstm_fc_kernel,
        out_shape=jax.ShapeDtypeStruct((B_pad, GP), jnp.float32),
        grid=(n_b,),
        in_specs=[
            pl.BlockSpec((T * BT, I), lambda b: (b, 0)),      # per-tile inputs
            pl.BlockSpec((I, 4 * GP), lambda b: (0, 0)),      # W_ih^T (padded)
            pl.BlockSpec((GP, 4 * GP), lambda b: (0, 0)),     # W_hh^T (padded)
            pl.BlockSpec((1, 4 * GP), lambda b: (0, 0)),      # bias
            pl.BlockSpec((1, GP), lambda b: (0, 0)),          # fc.weight
            pl.BlockSpec((1, 1), lambda b: (0, 0)),           # fc.bias
        ],
        out_specs=pl.BlockSpec((BT, GP), lambda b: (b, 0)),
        compiler_params=pltpu.CompilerParams(
            dimension_semantics=("parallel",)),
    )(x_flat, prepped["wih"], prepped["whh"], prepped["b"],
      prepped["fcw"], prepped["fcb"])

    return out[:B, 0:1]


def init_params(key, input_size, hidden_size):
    ks = jax.random.split(key, 6)
    bound = 1.0 / jnp.sqrt(hidden_size)
    u = lambda k, shape: jax.random.uniform(
        k, shape, jnp.float32, minval=-bound, maxval=bound)
    return {
        "w_ih": u(ks[0], (4 * hidden_size, input_size)),
        "w_hh": u(ks[1], (4 * hidden_size, hidden_size)),
        "b_ih": u(ks[2], (4 * hidden_size,)),
        "b_hh": u(ks[3], (4 * hidden_size,)),
        "fc_w": u(ks[4], (1, hidden_size)),
        "fc_b": u(ks[5], (1,)),
    }


def reference_forward(x, params):
    """Pure-JAX reference matching PyTorch LSTM semantics."""
    B, T, I = x.shape
    H = HIDDEN_SIZE
    h = jnp.zeros((B, H), jnp.float32)
    c = jnp.zeros((B, H), jnp.float32)
    b = params["b_ih"] + params["b_hh"]
    for t in range(T):
        gates = x[:, t, :] @ params["w_ih"].T + h @ params["w_hh"].T + b
        i_g = jax.nn.sigmoid(gates[:, 0 * H:1 * H])
        f_g = jax.nn.sigmoid(gates[:, 1 * H:2 * H])
        g_g = jnp.tanh(gates[:, 2 * H:3 * H])
        o_g = jax.nn.sigmoid(gates[:, 3 * H:4 * H])
        c = f_g * c + i_g * g_g
        h = o_g * jnp.tanh(c)
    return h @ params["fc_w"].T + params["fc_b"]


if __name__ == "__main__":
    key = jax.random.PRNGKey(0)
    k_x, k_p = jax.random.split(key)

    B, T = 2, 8
    x = jax.random.normal(k_x, (B, T, INPUT_SIZE), jnp.float32)
    params = init_params(k_p, INPUT_SIZE, HIDDEN_SIZE)
    prepped = prepare_params(params)   # one-time weight layout prep

    out = lstm_model_forward(x, prepped)
    out = jax.block_until_ready(out)

    ref = reference_forward(x, params)
    assert out.shape == (B, 1), out.shape
    assert jnp.allclose(out, ref, atol=1e-5, rtol=1e-5), (out, ref)

    print("KERNEL_OK")
</pallas_src>

<mosaic_0001>
module attributes {stable_mosaic.version = 11 : i64} {
  func.func @lstm_fc_kernel(%arg0: i32, %arg1: memref<64x3xf32, #tpu.memory_space<vmem>>, %arg2: memref<3x512xf32, #tpu.memory_space<vmem>>, %arg3: memref<128x512xf32, #tpu.memory_space<vmem>>, %arg4: memref<1x512xf32, #tpu.memory_space<vmem>>, %arg5: memref<1x128xf32, #tpu.memory_space<vmem>>, %arg6: memref<1x1xf32, #tpu.memory_space<vmem>>, %arg7: memref<8x128xf32, #tpu.memory_space<vmem>>) attributes {dimension_semantics = [#tpu.dimension_semantics<parallel>], iteration_bounds = array<i64: 1>, scalar_prefetch = 0 : i64, scratch_operands = 0 : i64, tpu.core_type = #tpu.core_type<tc>, window_params = [{transform_indices = @transform_0, window_bounds = array<i64: 64, 3>}, {pipeline_mode = #tpu.pipeline_mode<synchronous>, transform_indices = @transform_1, window_bounds = array<i64: 3, 512>}, {pipeline_mode = #tpu.pipeline_mode<synchronous>, transform_indices = @transform_2, window_bounds = array<i64: 128, 512>}, {pipeline_mode = #tpu.pipeline_mode<synchronous>, transform_indices = @transform_3, window_bounds = array<i64: 1, 512>}, {pipeline_mode = #tpu.pipeline_mode<synchronous>, transform_indices = @transform_4, window_bounds = array<i64: 1, 128>}, {pipeline_mode = #tpu.pipeline_mode<synchronous>, transform_indices = @transform_5, window_bounds = array<i64: 1, 1>}, {transform_indices = @transform_6, window_bounds = array<i64: 8, 128>}]} {
    %c0 = arith.constant 0 : index
    %c0_0 = arith.constant 0 : index
    %0 = vector.load %arg1[%c0, %c0_0] : memref<64x3xf32, #tpu.memory_space<vmem>>, vector<64x3xf32>
    %c0_1 = arith.constant 0 : index
    %c0_2 = arith.constant 0 : index
    %1 = vector.load %arg2[%c0_1, %c0_2] : memref<3x512xf32, #tpu.memory_space<vmem>>, vector<3x512xf32>
    %cst = arith.constant dense<0.000000e+00> : vector<64x512xf32>
    %2 = tpu.matmul %0, %1, %cst {dimension_numbers = #tpu.dot_dimension_numbers<[1], [0], [0], [1], [0, 0, 1, 1], [], []>} : vector<64x3xf32>, vector<3x512xf32>, vector<64x512xf32> -> vector<64x512xf32>
    %c0_3 = arith.constant 0 : index
    %c0_4 = arith.constant 0 : index
    %3 = vector.load %arg4[%c0_3, %c0_4] : memref<1x512xf32, #tpu.memory_space<vmem>>, vector<1x512xf32>
    %4 = vector.broadcast %3 : vector<1x512xf32> to vector<64x512xf32>
    %5 = arith.addf %2, %4 : vector<64x512xf32>
    %c0_5 = arith.constant 0 : index
    %c0_6 = arith.constant 0 : index
    %6 = vector.load %arg3[%c0_5, %c0_6] : memref<128x512xf32, #tpu.memory_space<vmem>>, vector<128x512xf32>
    %cst_7 = arith.constant 0.000000e+00 : f32
    %7 = vector.broadcast %cst_7 : f32 to vector<8x128xf32>
    %cst_8 = arith.constant 0.000000e+00 : f32
    %8 = vector.broadcast %cst_8 : f32 to vector<8x128xf32>
    %9 = vector.extract_strided_slice %5 {offsets = [0, 0], sizes = [8, 512], strides = [1, 1]} : vector<64x512xf32> to vector<8x512xf32>
    %cst_9 = arith.constant dense<0.000000e+00> : vector<8x512xf32>
    %10 = tpu.matmul %7, %6, %cst_9 {dimension_numbers = #tpu.dot_dimension_numbers<[1], [0], [0], [1], [0, 0, 1, 1], [], []>} : vector<8x128xf32>, vector<128x512xf32>, vector<8x512xf32> -> vector<8x512xf32>
    %11 = arith.addf %9, %10 : vector<8x512xf32>
    %12 = vector.extract_strided_slice %11 {offsets = [0, 0], sizes = [8, 128], strides = [1, 1]} : vector<8x512xf32> to vector<8x128xf32>
    %13 = arith.negf %12 : vector<8x128xf32>
    %14 = math.exp %13 : vector<8x128xf32>
    %cst_10 = arith.constant 1.000000e+00 : f32
    %15 = vector.broadcast %cst_10 : f32 to vector<8x128xf32>
    %16 = arith.addf %15, %14 : vector<8x128xf32>
    %17 = arith.divf %15, %16 : vector<8x128xf32>
    %18 = vector.extract_strided_slice %11 {offsets = [0, 128], sizes = [8, 128], strides = [1, 1]} : vector<8x512xf32> to vector<8x128xf32>
    %19 = arith.negf %18 : vector<8x128xf32>
    %20 = math.exp %19 : vector<8x128xf32>
    %cst_11 = arith.constant 1.000000e+00 : f32
    %21 = vector.broadcast %cst_11 : f32 to vector<8x128xf32>
    %22 = arith.addf %21, %20 : vector<8x128xf32>
    %23 = arith.divf %21, %22 : vector<8x128xf32>
    %24 = vector.extract_strided_slice %11 {offsets = [0, 256], sizes = [8, 128], strides = [1, 1]} : vector<8x512xf32> to vector<8x128xf32>
    %25 = math.tanh %24 : vector<8x128xf32>
    %26 = vector.extract_strided_slice %11 {offsets = [0, 384], sizes = [8, 128], strides = [1, 1]} : vector<8x512xf32> to vector<8x128xf32>
    %27 = arith.negf %26 : vector<8x128xf32>
    %28 = math.exp %27 : vector<8x128xf32>
    %cst_12 = arith.constant 1.000000e+00 : f32
    %29 = vector.broadcast %cst_12 : f32 to vector<8x128xf32>
    %30 = arith.addf %29, %28 : vector<8x128xf32>
    %31 = arith.divf %29, %30 : vector<8x128xf32>
    %32 = arith.mulf %23, %8 : vector<8x128xf32>
    %33 = arith.mulf %17, %25 : vector<8x128xf32>
    %34 = arith.addf %32, %33 : vector<8x128xf32>
    %35 = math.tanh %34 : vector<8x128xf32>
    %36 = arith.mulf %31, %35 : vector<8x128xf32>
    %37 = vector.extract_strided_slice %5 {offsets = [8, 0], sizes = [8, 512], strides = [1, 1]} : vector<64x512xf32> to vector<8x512xf32>
    %cst_13 = arith.constant dense<0.000000e+00> : vector<8x512xf32>
    %38 = tpu.matmul %36, %6, %cst_13 {dimension_numbers = #tpu.dot_dimension_numbers<[1], [0], [0], [1], [0, 0, 1, 1], [], []>} : vector<8x128xf32>, vector<128x512xf32>, vector<8x512xf32> -> vector<8x512xf32>
    %39 = arith.addf %37, %38 : vector<8x512xf32>
    %40 = vector.extract_strided_slice %39 {offsets = [0, 0], sizes = [8, 128], strides = [1, 1]} : vector<8x512xf32> to vector<8x128xf32>
    %41 = arith.negf %40 : vector<8x128xf32>
    %42 = math.exp %41 : vector<8x128xf32>
    %cst_14 = arith.constant 1.000000e+00 : f32
    %43 = vector.broadcast %cst_14 : f32 to vector<8x128xf32>
    %44 = arith.addf %43, %42 : vector<8x128xf32>
    %45 = arith.divf %43, %44 : vector<8x128xf32>
    %46 = vector.extract_strided_slice %39 {offsets = [0, 128], sizes = [8, 128], strides = [1, 1]} : vector<8x512xf32> to vector<8x128xf32>
    %47 = arith.negf %46 : vector<8x128xf32>
    %48 = math.exp %47 : vector<8x128xf32>
    %cst_15 = arith.constant 1.000000e+00 : f32
    %49 = vector.broadcast %cst_15 : f32 to vector<8x128xf32>
    %50 = arith.addf %49, %48 : vector<8x128xf32>
    %51 = arith.divf %49, %50 : vector<8x128xf32>
    %52 = vector.extract_strided_slice %39 {offsets = [0, 256], sizes = [8, 128], strides = [1, 1]} : vector<8x512xf32> to vector<8x128xf32>
    %53 = math.tanh %52 : vector<8x128xf32>
    %54 = vector.extract_strided_slice %39 {offsets = [0, 384], sizes = [8, 128], strides = [1, 1]} : vector<8x512xf32> to vector<8x128xf32>
    %55 = arith.negf %54 : vector<8x128xf32>
    %56 = math.exp %55 : vector<8x128xf32>
    %cst_16 = arith.constant 1.000000e+00 : f32
    %57 = vector.broadcast %cst_16 : f32 to vector<8x128xf32>
    %58 = arith.addf %57, %56 : vector<8x128xf32>
    %59 = arith.divf %57, %58 : vector<8x128xf32>
    %60 = arith.mulf %51, %34 : vector<8x128xf32>
    %61 = arith.mulf %45, %53 : vector<8x128xf32>
    %62 = arith.addf %60, %61 : vector<8x128xf32>
    %63 = math.tanh %62 : vector<8x128xf32>
    %64 = arith.mulf %59, %63 : vector<8x128xf32>
    %65 = vector.extract_strided_slice %5 {offsets = [16, 0], sizes = [8, 512], strides = [1, 1]} : vector<64x512xf32> to vector<8x512xf32>
    %cst_17 = arith.constant dense<0.000000e+00> : vector<8x512xf32>
    %66 = tpu.matmul %64, %6, %cst_17 {dimension_numbers = #tpu.dot_dimension_numbers<[1], [0], [0], [1], [0, 0, 1, 1], [], []>} : vector<8x128xf32>, vector<128x512xf32>, vector<8x512xf32> -> vector<8x512xf32>
    %67 = arith.addf %65, %66 : vector<8x512xf32>
    %68 = vector.extract_strided_slice %67 {offsets = [0, 0], sizes = [8, 128], strides = [1, 1]} : vector<8x512xf32> to vector<8x128xf32>
    %69 = arith.negf %68 : vector<8x128xf32>
    %70 = math.exp %69 : vector<8x128xf32>
    %cst_18 = arith.constant 1.000000e+00 : f32
    %71 = vector.broadcast %cst_18 : f32 to vector<8x128xf32>
    %72 = arith.addf %71, %70 : vector<8x128xf32>
    %73 = arith.divf %71, %72 : vector<8x128xf32>
    %74 = vector.extract_strided_slice %67 {offsets = [0, 128], sizes = [8, 128], strides = [1, 1]} : vector<8x512xf32> to vector<8x128xf32>
    %75 = arith.negf %74 : vector<8x128xf32>
    %76 = math.exp %75 : vector<8x128xf32>
    %cst_19 = arith.constant 1.000000e+00 : f32
    %77 = vector.broadcast %cst_19 : f32 to vector<8x128xf32>
    %78 = arith.addf %77, %76 : vector<8x128xf32>
    %79 = arith.divf %77, %78 : vector<8x128xf32>
    %80 = vector.extract_strided_slice %67 {offsets = [0, 256], sizes = [8, 128], strides = [1, 1]} : vector<8x512xf32> to vector<8x128xf32>
    %81 = math.tanh %80 : vector<8x128xf32>
    %82 = vector.extract_strided_slice %67 {offsets = [0, 384], sizes = [8, 128], strides = [1, 1]} : vector<8x512xf32> to vector<8x128xf32>
    %83 = arith.negf %82 : vector<8x128xf32>
    %84 = math.exp %83 : vector<8x128xf32>
    %cst_20 = arith.constant 1.000000e+00 : f32
    %85 = vector.broadcast %cst_20 : f32 to vector<8x128xf32>
    %86 = arith.addf %85, %84 : vector<8x128xf32>
    %87 = arith.divf %85, %86 : vector<8x128xf32>
    %88 = arith.mulf %79, %62 : vector<8x128xf32>
    %89 = arith.mulf %73, %81 : vector<8x128xf32>
    %90 = arith.addf %88, %89 : vector<8x128xf32>
    %91 = math.tanh %90 : vector<8x128xf32>
    %92 = arith.mulf %87, %91 : vector<8x128xf32>
    %93 = vector.extract_strided_slice %5 {offsets = [24, 0], sizes = [8, 512], strides = [1, 1]} : vector<64x512xf32> to vector<8x512xf32>
    %cst_21 = arith.constant dense<0.000000e+00> : vector<8x512xf32>
    %94 = tpu.matmul %92, %6, %cst_21 {dimension_numbers = #tpu.dot_dimension_numbers<[1], [0], [0], [1], [0, 0, 1, 1], [], []>} : vector<8x128xf32>, vector<128x512xf32>, vector<8x512xf32> -> vector<8x512xf32>
    %95 = arith.addf %93, %94 : vector<8x512xf32>
    %96 = vector.extract_strided_slice %95 {offsets = [0, 0], sizes = [8, 128], strides = [1, 1]} : vector<8x512xf32> to vector<8x128xf32>
    %97 = arith.negf %96 : vector<8x128xf32>
    %98 = math.exp %97 : vector<8x128xf32>
    %cst_22 = arith.constant 1.000000e+00 : f32
    %99 = vector.broadcast %cst_22 : f32 to vector<8x128xf32>
    %100 = arith.addf %99, %98 : vector<8x128xf32>
    %101 = arith.divf %99, %100 : vector<8x128xf32>
    %102 = vector.extract_strided_slice %95 {offsets = [0, 128], sizes = [8, 128], strides = [1, 1]} : vector<8x512xf32> to vector<8x128xf32>
    %103 = arith.negf %102 : vector<8x128xf32>
    %104 = math.exp %103 : vector<8x128xf32>
    %cst_23 = arith.constant 1.000000e+00 : f32
    %105 = vector.broadcast %cst_23 : f32 to vector<8x128xf32>
    %106 = arith.addf %105, %104 : vector<8x128xf32>
    %107 = arith.divf %105, %106 : vector<8x128xf32>
    %108 = vector.extract_strided_slice %95 {offsets = [0, 256], sizes = [8, 128], strides = [1, 1]} : vector<8x512xf32> to vector<8x128xf32>
    %109 = math.tanh %108 : vector<8x128xf32>
    %110 = vector.extract_strided_slice %95 {offsets = [0, 384], sizes = [8, 128], strides = [1, 1]} : vector<8x512xf32> to vector<8x128xf32>
    %111 = arith.negf %110 : vector<8x128xf32>
    %112 = math.exp %111 : vector<8x128xf32>
    %cst_24 = arith.constant 1.000000e+00 : f32
    %113 = vector.broadcast %cst_24 : f32 to vector<8x128xf32>
    %114 = arith.addf %113, %112 : vector<8x128xf32>
    %115 = arith.divf %113, %114 : vector<8x128xf32>
    %116 = arith.mulf %107, %90 : vector<8x128xf32>
    %117 = arith.mulf %101, %109 : vector<8x128xf32>
    %118 = arith.addf %116, %117 : vector<8x128xf32>
    %119 = math.tanh %118 : vector<8x128xf32>
    %120 = arith.mulf %115, %119 : vector<8x128xf32>
    %121 = vector.extract_strided_slice %5 {offsets = [32, 0], sizes = [8, 512], strides = [1, 1]} : vector<64x512xf32> to vector<8x512xf32>
    %cst_25 = arith.constant dense<0.000000e+00> : vector<8x512xf32>
    %122 = tpu.matmul %120, %6, %cst_25 {dimension_numbers = #tpu.dot_dimension_numbers<[1], [0], [0], [1], [0, 0, 1, 1], [], []>} : vector<8x128xf32>, vector<128x512xf32>, vector<8x512xf32> -> vector<8x512xf32>
    %123 = arith.addf %121, %122 : vector<8x512xf32>
    %124 = vector.extract_strided_slice %123 {offsets = [0, 0], sizes = [8, 128], strides = [1, 1]} : vector<8x512xf32> to vector<8x128xf32>
    %125 = arith.negf %124 : vector<8x128xf32>
    %126 = math.exp %125 : vector<8x128xf32>
    %cst_26 = arith.constant 1.000000e+00 : f32
    %127 = vector.broadcast %cst_26 : f32 to vector<8x128xf32>
    %128 = arith.addf %127, %126 : vector<8x128xf32>
    %129 = arith.divf %127, %128 : vector<8x128xf32>
    %130 = vector.extract_strided_slice %123 {offsets = [0, 128], sizes = [8, 128], strides = [1, 1]} : vector<8x512xf32> to vector<8x128xf32>
    %131 = arith.negf %130 : vector<8x128xf32>
    %132 = math.exp %131 : vector<8x128xf32>
    %cst_27 = arith.constant 1.000000e+00 : f32
    %133 = vector.broadcast %cst_27 : f32 to vector<8x128xf32>
    %134 = arith.addf %133, %132 : vector<8x128xf32>
    %135 = arith.divf %133, %134 : vector<8x128xf32>
    %136 = vector.extract_strided_slice %123 {offsets = [0, 256], sizes = [8, 128], strides = [1, 1]} : vector<8x512xf32> to vector<8x128xf32>
    %137 = math.tanh %136 : vector<8x128xf32>
    %138 = vector.extract_strided_slice %123 {offsets = [0, 384], sizes = [8, 128], strides = [1, 1]} : vector<8x512xf32> to vector<8x128xf32>
    %139 = arith.negf %138 : vector<8x128xf32>
    %140 = math.exp %139 : vector<8x128xf32>
    %cst_28 = arith.constant 1.000000e+00 : f32
    %141 = vector.broadcast %cst_28 : f32 to vector<8x128xf32>
    %142 = arith.addf %141, %140 : vector<8x128xf32>
    %143 = arith.divf %141, %142 : vector<8x128xf32>
    %144 = arith.mulf %135, %118 : vector<8x128xf32>
    %145 = arith.mulf %129, %137 : vector<8x128xf32>
    %146 = arith.addf %144, %145 : vector<8x128xf32>
    %147 = math.tanh %146 : vector<8x128xf32>
    %148 = arith.mulf %143, %147 : vector<8x128xf32>
    %149 = vector.extract_strided_slice %5 {offsets = [40, 0], sizes = [8, 512], strides = [1, 1]} : vector<64x512xf32> to vector<8x512xf32>
    %cst_29 = arith.constant dense<0.000000e+00> : vector<8x512xf32>
    %150 = tpu.matmul %148, %6, %cst_29 {dimension_numbers = #tpu.dot_dimension_numbers<[1], [0], [0], [1], [0, 0, 1, 1], [], []>} : vector<8x128xf32>, vector<128x512xf32>, vector<8x512xf32> -> vector<8x512xf32>
    %151 = arith.addf %149, %150 : vector<8x512xf32>
    %152 = vector.extract_strided_slice %151 {offsets = [0, 0], sizes = [8, 128], strides = [1, 1]} : vector<8x512xf32> to vector<8x128xf32>
    %153 = arith.negf %152 : vector<8x128xf32>
    %154 = math.exp %153 : vector<8x128xf32>
    %cst_30 = arith.constant 1.000000e+00 : f32
    %155 = vector.broadcast %cst_30 : f32 to vector<8x128xf32>
    %156 = arith.addf %155, %154 : vector<8x128xf32>
    %157 = arith.divf %155, %156 : vector<8x128xf32>
    %158 = vector.extract_strided_slice %151 {offsets = [0, 128], sizes = [8, 128], strides = [1, 1]} : vector<8x512xf32> to vector<8x128xf32>
    %159 = arith.negf %158 : vector<8x128xf32>
    %160 = math.exp %159 : vector<8x128xf32>
    %cst_31 = arith.constant 1.000000e+00 : f32
    %161 = vector.broadcast %cst_31 : f32 to vector<8x128xf32>
    %162 = arith.addf %161, %160 : vector<8x128xf32>
    %163 = arith.divf %161, %162 : vector<8x128xf32>
    %164 = vector.extract_strided_slice %151 {offsets = [0, 256], sizes = [8, 128], strides = [1, 1]} : vector<8x512xf32> to vector<8x128xf32>
    %165 = math.tanh %164 : vector<8x128xf32>
    %166 = vector.extract_strided_slice %151 {offsets = [0, 384], sizes = [8, 128], strides = [1, 1]} : vector<8x512xf32> to vector<8x128xf32>
    %167 = arith.negf %166 : vector<8x128xf32>
    %168 = math.exp %167 : vector<8x128xf32>
    %cst_32 = arith.constant 1.000000e+00 : f32
    %169 = vector.broadcast %cst_32 : f32 to vector<8x128xf32>
    %170 = arith.addf %169, %168 : vector<8x128xf32>
    %171 = arith.divf %169, %170 : vector<8x128xf32>
    %172 = arith.mulf %163, %146 : vector<8x128xf32>
    %173 = arith.mulf %157, %165 : vector<8x128xf32>
    %174 = arith.addf %172, %173 : vector<8x128xf32>
    %175 = math.tanh %174 : vector<8x128xf32>
    %176 = arith.mulf %171, %175 : vector<8x128xf32>
    %177 = vector.extract_strided_slice %5 {offsets = [48, 0], sizes = [8, 512], strides = [1, 1]} : vector<64x512xf32> to vector<8x512xf32>
    %cst_33 = arith.constant dense<0.000000e+00> : vector<8x512xf32>
    %178 = tpu.matmul %176, %6, %cst_33 {dimension_numbers = #tpu.dot_dimension_numbers<[1], [0], [0], [1], [0, 0, 1, 1], [], []>} : vector<8x128xf32>, vector<128x512xf32>, vector<8x512xf32> -> vector<8x512xf32>
    %179 = arith.addf %177, %178 : vector<8x512xf32>
    %180 = vector.extract_strided_slice %179 {offsets = [0, 0], sizes = [8, 128], strides = [1, 1]} : vector<8x512xf32> to vector<8x128xf32>
    %181 = arith.negf %180 : vector<8x128xf32>
    %182 = math.exp %181 : vector<8x128xf32>
    %cst_34 = arith.constant 1.000000e+00 : f32
    %183 = vector.broadcast %cst_34 : f32 to vector<8x128xf32>
    %184 = arith.addf %183, %182 : vector<8x128xf32>
    %185 = arith.divf %183, %184 : vector<8x128xf32>
    %186 = vector.extract_strided_slice %179 {offsets = [0, 128], sizes = [8, 128], strides = [1, 1]} : vector<8x512xf32> to vector<8x128xf32>
    %187 = arith.negf %186 : vector<8x128xf32>
    %188 = math.exp %187 : vector<8x128xf32>
    %cst_35 = arith.constant 1.000000e+00 : f32
    %189 = vector.broadcast %cst_35 : f32 to vector<8x128xf32>
    %190 = arith.addf %189, %188 : vector<8x128xf32>
    %191 = arith.divf %189, %190 : vector<8x128xf32>
    %192 = vector.extract_strided_slice %179 {offsets = [0, 256], sizes = [8, 128], strides = [1, 1]} : vector<8x512xf32> to vector<8x128xf32>
    %193 = math.tanh %192 : vector<8x128xf32>
    %194 = vector.extract_strided_slice %179 {offsets = [0, 384], sizes = [8, 128], strides = [1, 1]} : vector<8x512xf32> to vector<8x128xf32>
    %195 = arith.negf %194 : vector<8x128xf32>
    %196 = math.exp %195 : vector<8x128xf32>
    %cst_36 = arith.constant 1.000000e+00 : f32
    %197 = vector.broadcast %cst_36 : f32 to vector<8x128xf32>
    %198 = arith.addf %197, %196 : vector<8x128xf32>
    %199 = arith.divf %197, %198 : vector<8x128xf32>
    %200 = arith.mulf %191, %174 : vector<8x128xf32>
    %201 = arith.mulf %185, %193 : vector<8x128xf32>
    %202 = arith.addf %200, %201 : vector<8x128xf32>
    %203 = math.tanh %202 : vector<8x128xf32>
    %204 = arith.mulf %199, %203 : vector<8x128xf32>
    %205 = vector.extract_strided_slice %5 {offsets = [56, 0], sizes = [8, 512], strides = [1, 1]} : vector<64x512xf32> to vector<8x512xf32>
    %cst_37 = arith.constant dense<0.000000e+00> : vector<8x512xf32>
    %206 = tpu.matmul %204, %6, %cst_37 {dimension_numbers = #tpu.dot_dimension_numbers<[1], [0], [0], [1], [0, 0, 1, 1], [], []>} : vector<8x128xf32>, vector<128x512xf32>, vector<8x512xf32> -> vector<8x512xf32>
    %207 = arith.addf %205, %206 : vector<8x512xf32>
    %208 = vector.extract_strided_slice %207 {offsets = [0, 0], sizes = [8, 128], strides = [1, 1]} : vector<8x512xf32> to vector<8x128xf32>
    %209 = arith.negf %208 : vector<8x128xf32>
    %210 = math.exp %209 : vector<8x128xf32>
    %cst_38 = arith.constant 1.000000e+00 : f32
    %211 = vector.broadcast %cst_38 : f32 to vector<8x128xf32>
    %212 = arith.addf %211, %210 : vector<8x128xf32>
    %213 = arith.divf %211, %212 : vector<8x128xf32>
    %214 = vector.extract_strided_slice %207 {offsets = [0, 128], sizes = [8, 128], strides = [1, 1]} : vector<8x512xf32> to vector<8x128xf32>
    %215 = arith.negf %214 : vector<8x128xf32>
    %216 = math.exp %215 : vector<8x128xf32>
    %cst_39 = arith.constant 1.000000e+00 : f32
    %217 = vector.broadcast %cst_39 : f32 to vector<8x128xf32>
    %218 = arith.addf %217, %216 : vector<8x128xf32>
    %219 = arith.divf %217, %218 : vector<8x128xf32>
    %220 = vector.extract_strided_slice %207 {offsets = [0, 256], sizes = [8, 128], strides = [1, 1]} : vector<8x512xf32> to vector<8x128xf32>
    %221 = math.tanh %220 : vector<8x128xf32>
    %222 = vector.extract_strided_slice %207 {offsets = [0, 384], sizes = [8, 128], strides = [1, 1]} : vector<8x512xf32> to vector<8x128xf32>
    %223 = arith.negf %222 : vector<8x128xf32>
    %224 = math.exp %223 : vector<8x128xf32>
    %cst_40 = arith.constant 1.000000e+00 : f32
    %225 = vector.broadcast %cst_40 : f32 to vector<8x128xf32>
    %226 = arith.addf %225, %224 : vector<8x128xf32>
    %227 = arith.divf %225, %226 : vector<8x128xf32>
    %228 = arith.mulf %219, %202 : vector<8x128xf32>
    %229 = arith.mulf %213, %221 : vector<8x128xf32>
    %230 = arith.addf %228, %229 : vector<8x128xf32>
    %231 = math.tanh %230 : vector<8x128xf32>
    %232 = arith.mulf %227, %231 : vector<8x128xf32>
    %c0_41 = arith.constant 0 : index
    %c0_42 = arith.constant 0 : index
    %233 = vector.load %arg5[%c0_41, %c0_42] : memref<1x128xf32, #tpu.memory_space<vmem>>, vector<1x128xf32>
    %234 = vector.broadcast %233 : vector<1x128xf32> to vector<8x128xf32>
    %235 = arith.mulf %232, %234 : vector<8x128xf32>
    %cst_43 = arith.constant dense<0.000000e+00> : vector<8xf32>
    %236 = vector.multi_reduction <add>, %235, %cst_43 [1] : vector<8x128xf32> to vector<8xf32>
    %237 = vector.shape_cast %236 : vector<8xf32> to vector<8x1xf32>
    %c0_44 = arith.constant 0 : index
    %c0_45 = arith.constant 0 : index
    %238 = vector.load %arg6[%c0_44, %c0_45] : memref<1x1xf32, #tpu.memory_space<vmem>>, vector<1x1xf32>
    %239 = vector.broadcast %238 : vector<1x1xf32> to vector<8x1xf32>
    %240 = arith.addf %237, %239 : vector<8x1xf32>
    %241 = vector.shape_cast %240 : vector<8x1xf32> to vector<8x1xf32>
    %242 = vector.broadcast %241 : vector<8x1xf32> to vector<8x128xf32>
    %c0_46 = arith.constant 0 : index
    %c0_47 = arith.constant 0 : index
    %243 = vector.load %arg7[%c0_46, %c0_47] : memref<8x128xf32, #tpu.memory_space<vmem>>, vector<8x128xf32>
    tpu.vector_store %arg7[%c0_46, %c0_47], %242 {strides = array<i32>} : memref<8x128xf32, #tpu.memory_space<vmem>>, vector<8x128xf32>,
    return
  }
  func.func @transform_0(%arg0: i32) -> (i32, i32) {
    %c0_i32 = arith.constant 0 : i32
    %c0_i32_0 = arith.constant 0 : i32
    return %arg0, %c0_i32 : i32, i32
  }
  func.func @transform_1(%arg0: i32) -> (i32, i32) {
    %c0_i32 = arith.constant 0 : i32
    %c0_i32_0 = arith.constant 0 : i32
    %c0_i32_1 = arith.constant 0 : i32
    return %c0_i32, %c0_i32_0 : i32, i32
  }
  func.func @transform_2(%arg0: i32) -> (i32, i32) {
    %c0_i32 = arith.constant 0 : i32
    %c0_i32_0 = arith.constant 0 : i32
    %c0_i32_1 = arith.constant 0 : i32
    return %c0_i32, %c0_i32_0 : i32, i32
  }
  func.func @transform_3(%arg0: i32) -> (i32, i32) {
    %c0_i32 = arith.constant 0 : i32
    %c0_i32_0 = arith.constant 0 : i32
    %c0_i32_1 = arith.constant 0 : i32
    return %c0_i32, %c0_i32_0 : i32, i32
  }
  func.func @transform_4(%arg0: i32) -> (i32, i32) {
    %c0_i32 = arith.constant 0 : i32
    %c0_i32_0 = arith.constant 0 : i32
    %c0_i32_1 = arith.constant 0 : i32
    return %c0_i32, %c0_i32_0 : i32, i32
  }
  func.func @transform_5(%arg0: i32) -> (i32, i32) {
    %c0_i32 = arith.constant 0 : i32
    %c0_i32_0 = arith.constant 0 : i32
    %c0_i32_1 = arith.constant 0 : i32
    return %c0_i32, %c0_i32_0 : i32, i32
  }
  func.func @transform_6(%arg0: i32) -> (i32, i32) {
    %c0_i32 = arith.constant 0 : i32
    %c0_i32_0 = arith.constant 0 : i32
    return %arg0, %c0_i32 : i32, i32
  }
}

</mosaic_0001>

<llo_original>
// kernel: lstm_model_forward.1
$region0: #{lstm_model_forward.1}
  #allocation0 [shape = 'u32[]', space=smem, size = 0x4, offset = 0x4, fixed_abs, tag = 'smem constant byte address 0x4 - core index']
  #allocation1 [shape = 'u32[144,128]{1,0:T(1,128)}', space=vmem, size = 0x12000, scoped, tag = 'internal scratch']
  #allocation2 [shape = 'f32[1,1]{1,0:T(1,128)S(1)}', space=vmem, size = 0x200, scoped, tag = 'scoped memory for lstm_model_forward.1']
  %s0 = inlined_call_operand.vmem [shape: f32[64,3], index: 0, kind: input, shape index: {}]
  %s1 = inlined_call_operand.vmem [shape: f32[3,512], index: 1, kind: input, shape index: {}]
  %s2 = inlined_call_operand.hbm [shape: f32[128,512], index: 2, kind: input, shape index: {}]
  %s3 = inlined_call_operand.vmem [shape: f32[1,512], index: 3, kind: input, shape index: {}]
  %s4 = inlined_call_operand.vmem [shape: f32[1,128], index: 4, kind: input, shape index: {}]
  %s5 = inlined_call_operand.<no memory space> [shape: f32[1,1], index: 5, kind: input, shape index: {}]
  %s6 = inlined_call_operand.vmem [shape: f32[8,128], index: 6, kind: output, shape index: {}]
  %s7 = sld [smem:[#allocation0]]
  $region38: #{lstm_model_forward.1} parent=0
    _
  %s9 = ssub.s32 1, %s7
  %s10 = scalar_select 0, %s9, %s7
  %v11 = vstv %s5
  %12 = vst [vmem:[#allocation2] sm:$0x1] %v11
  $region1: #{lstm_model_forward.1} parent=0
    #allocation3 [shape = 'u8[262144]{0}', space=vmem, size = 0x40000, scoped, tag = 'input window, operand 2, single buffered']
    #allocation4 [shape = 's32[1]{0}', space=sflag, size = 0x4, scoped, tag = 'scoped memory for lstm_model_forward.1']
    %13 = vsyncpa [#allocation4], 0
    // Predicated region
    $region2: #{lstm_model_forward.1} parent=1 // pred_check
      _
    $region3: #{lstm_model_forward.1} parent=1 // pred_check_branch
      %15 = sbr.rel (0) target = $region5
    $region4: #{lstm_model_forward.1} parent=1 // pred_region
      _
    $region5: #{lstm_model_forward.1} parent=1 // pred_fallthru
      _
    // Predicated region
    $region6: #{lstm_model_forward.1} parent=1 // pred_check
      _
    $region7: #{lstm_model_forward.1} parent=1 // pred_check_branch
      %17 = sbr.rel (0) target = $region9
    $region8: #{lstm_model_forward.1} parent=1 // pred_region
      _
    $region9: #{lstm_model_forward.1} parent=1 // pred_fallthru
      _
    // Predicated region
    $region10: #{lstm_model_forward.1} parent=1 // pred_check
      _
    $region11: #{lstm_model_forward.1} parent=1 // pred_check_branch
      %19 = sbr.rel (0) target = $region13
    $region12: #{lstm_model_forward.1} parent=1 // pred_region
      %s21 = ssub.s32 8192, 8192
      %22 = vsyncadd [#allocation4], %s21
      %s23 = sshll.u32 [#allocation3], 4
      %s24 = int_to_ptr.vmem [resolvable:$true] %s23
      %29 = dma.hbm_to_vmem [thread:$0]  %s2, 8192, %s24, [#allocation4], 512, 512, 32
    $region13: #{lstm_model_forward.1} parent=1 // pred_fallthru
      _
    // Predicated region
    $region14: #{lstm_model_forward.1} parent=1 // pred_check
      _
    $region15: #{lstm_model_forward.1} parent=1 // pred_check_branch
      %31 = sbr.rel (0) target = $region17
    $region16: #{lstm_model_forward.1} parent=1 // pred_region
      _
    $region17: #{lstm_model_forward.1} parent=1 // pred_fallthru
      _
    // Predicated region
    $region18: #{lstm_model_forward.1} parent=1 // pred_check
      _
    $region19: #{lstm_model_forward.1} parent=1 // pred_check_branch
      %33 = sbr.rel (0) target = $region21
    $region20: #{lstm_model_forward.1} parent=1 // pred_region
      _
    $region21: #{lstm_model_forward.1} parent=1 // pred_fallthru
      _
    // Predicated region
    $region22: #{lstm_model_forward.1} parent=1 // pred_check
      _
    $region23: #{lstm_model_forward.1} parent=1 // pred_check_branch
      %35 = sbr.rel (0) target = $region25
    $region24: #{lstm_model_forward.1} parent=1 // pred_region
      _
    $region25: #{lstm_model_forward.1} parent=1 // pred_fallthru
      _
    // Predicated region
    $region26: #{lstm_model_forward.1} parent=1 // pred_check
      _
    $region27: #{lstm_model_forward.1} parent=1 // pred_check_branch
      %37 = sbr.rel (0) target = $region29
    $region28: #{lstm_model_forward.1} parent=1 // pred_region
      %38 = dma.done [#allocation4], 8192
    $region29: #{lstm_model_forward.1} parent=1 // pred_fallthru
      _
    %v39 = vld [vmem:[%s0] sm:$0xff]
    %v40 = vld [vmem:[%s0 + $0x8] sm:$0xff]
    %v41 = vld [vmem:[%s0 + $0x10] sm:$0xff]
    %v42 = vld [vmem:[%s0 + $0x18] sm:$0xff]
    %v43 = vld [vmem:[%s0 + $0x20] sm:$0xff]
    %v44 = vld [vmem:[%s0 + $0x28] sm:$0xff]
    %v45 = vld [vmem:[%s0 + $0x30] sm:$0xff]
    %v46 = vld [vmem:[%s0 + $0x38] sm:$0xff]
    %v47 = vld [vmem:[%s1] sm:$0x77]
    %v48 = vld [vmem:[%s1 + $0x8] sm:$0x77]
    %v49 = vld [vmem:[%s3] sm:$0xf]
    %v51 = vlaneseq
    %v52 = vshrl.u32 %v51, 7
    %v53 = vsub.s32 0, %v52
    %v54 = vrot.slane %v49, %v53
    %v55 = vlaneseq
    %v56 = vshrl.u32 %v55, 7
    %v57 = vsub.s32 1, %v56
    %v58 = vrot.slane %v49, %v57
    %v59 = vlaneseq
    %v60 = vshrl.u32 %v59, 7
    %v61 = vsub.s32 2, %v60
    %v62 = vrot.slane %v49, %v61
    %v63 = vlaneseq
    %v64 = vshrl.u32 %v63, 7
    %v65 = vsub.s32 3, %v64
    %v66 = vrot.slane %v49, %v65
    %v73 = vcombine.high %v47, %v47
    %v74 = vcombine.high %v48, %v48
    %vm75 = vcmask 23552
    %v77 = vsel %vm75, %v39, 0
    %v80 = vsel %vm75, %v40, 0
    %v83 = vsel %vm75, %v41, 0
    %v86 = vsel %vm75, %v42, 0
    %v89 = vsel %vm75, %v43, 0
    %v92 = vsel %vm75, %v44, 0
    %v95 = vsel %vm75, %v45, 0
    %v98 = vsel %vm75, %v46, 0
    %vm100 = vcmask 1042432
    %v101 = vsel %vm100, %v47, 0
    %v103 = vsel %vm100, %v73, 0
    %v105 = vsel %vm100, %v48, 0
    %v107 = vsel %vm100, %v74, 0
    %109 = vmatprep.subr.mxu0 %v103
    %110 = vmatpush1.msra.mxu0 %v101
    %111 = vmatprep.subr.mxu0 0.0
    %112 = vmatpush1.msra.mxu0 0.0
    %113 = vmatprep.subr.mxu0 0.0
    %114 = vmatpush1.msra.mxu0 0.0
    %115 = vmatprep.subr.mxu0 0.0
    %116 = vmatpush1.msra.mxu0 0.0
    %117 = vmatprep.subr.mxu0 0.0
    %118 = vmatpush1.msra.mxu0 0.0
    %119 = vmatprep.subr.mxu0 0.0
    %120 = vmatpush1.msra.mxu0 0.0
    %121 = vmatprep.subr.mxu0 0.0
    %122 = vmatpush1.msra.mxu0 0.0
    %123 = vmatprep.subr.mxu0 0.0
    %124 = vmatpush1.msra.mxu0 0.0
    %125 = vmatprep.subr.mxu0 0.0
    %126 = vmatpush1.msra.mxu0 0.0
    %127 = vmatprep.subr.mxu0 0.0
    %128 = vmatpush1.msra.mxu0 0.0
    %129 = vmatprep.subr.mxu0 0.0
    %130 = vmatpush1.msra.mxu0 0.0
    %131 = vmatprep.subr.mxu0 0.0
    %132 = vmatpush1.msra.mxu0 0.0
    %133 = vmatprep.subr.mxu0 0.0
    %134 = vmatpush1.msra.mxu0 0.0
    %135 = vmatprep.subr.mxu0 0.0
    %136 = vmatpush1.msra.mxu0 0.0
    %137 = vmatprep.subr.mxu0 0.0
    %138 = vmatpush1.msra.mxu0 0.0
    %139 = vmatprep.subr.mxu0 0.0
    %140 = vmatpush1.msra.mxu0 0.0
    %141 = vmatprep.subr.mxu0 0.0
    %142 = vmatpush1.msra.mxu0 0.0
    %143 = vmatprep.subr.mxu0 0.0
    %144 = vmatpush1.msra.mxu0 0.0
    %145 = vmatprep.subr.mxu0 0.0
    %146 = vmatpush1.msra.mxu0 0.0
    %147 = vmatprep.subr.mxu0 0.0
    %148 = vmatpush1.msra.mxu0 0.0
    %149 = vmatprep.subr.mxu0 0.0
    %150 = vmatpush1.msra.mxu0 0.0
    %151 = vmatprep.subr.mxu0 0.0
    %152 = vmatpush1.msra.mxu0 0.0
    %153 = vmatprep.subr.mxu0 0.0
    %154 = vmatpush1.msra.mxu0 0.0
    %155 = vmatprep.subr.mxu0 0.0
    %156 = vmatpush1.msra.mxu0 0.0
    %157 = vmatprep.subr.mxu0 0.0
    %158 = vmatpush1.msra.mxu0 0.0
    %159 = vmatprep.subr.mxu0 0.0
    %160 = vmatpush1.msra.mxu0 0.0
    %161 = vmatprep.subr.mxu0 0.0
    %162 = vmatpush1.msra.mxu0 0.0
    %163 = vmatprep.subr.mxu0 0.0
    %164 = vmatpush1.msra.mxu0 0.0
    %165 = vmatprep.subr.mxu0 0.0
    %166 = vmatpush1.msra.mxu0 0.0
    %167 = vmatprep.subr.mxu0 0.0
    %168 = vmatpush1.msra.mxu0 0.0
    %169 = vmatprep.subr.mxu0 0.0
    %170 = vmatpush1.msra.mxu0 0.0
    %171 = vmatprep.subr.mxu0 0.0
    %172 = vmatpush1.msra.mxu0 0.0
    %173 = vmatprep.mubr.f32.mxu0 0.0
    %174 = vmatmul.mubr.f32.gmra.mrb[0].mxu0 %v77
    %v175 = vpop.f32.mrb[0].mxu0
    %v176 = vadd.f32 %v54, %v175
    %v177 = vpop.f32.mrb[0].mxu0
    %v178 = vadd.f32 %v58, %v177
    %179 = vmatprep.mubr.f32.mxu0 0.0
    %180 = vmatmul.mubr.f32.gmra.mrb[0].mxu0 %v80
    %v181 = vpop.f32.mrb[0].mxu0
    %v182 = vadd.f32 %v54, %v181
    %v183 = vpop.f32.mrb[0].mxu0
    %v184 = vadd.f32 %v58, %v183
    %185 = vmatprep.mubr.f32.mxu0 0.0
    %186 = vmatmul.mubr.f32.gmra.mrb[0].mxu0 %v83
    %v187 = vpop.f32.mrb[0].mxu0
    %v188 = vadd.f32 %v54, %v187
    %v189 = vpop.f32.mrb[0].mxu0
    %v190 = vadd.f32 %v58, %v189
    %191 = vmatprep.mubr.f32.mxu0 0.0
    %192 = vmatmul.mubr.f32.gmra.mrb[0].mxu0 %v86
    %v193 = vpop.f32.mrb[0].mxu0
    %v194 = vadd.f32 %v54, %v193
    %v195 = vpop.f32.mrb[0].mxu0
    %v196 = vadd.f32 %v58, %v195
    %197 = vmatprep.mubr.f32.mxu0 0.0
    %198 = vmatmul.mubr.f32.gmra.mrb[0].mxu0 %v89
    %v199 = vpop.f32.mrb[0].mxu0
    %v200 = vadd.f32 %v54, %v199
    %v201 = vpop.f32.mrb[0].mxu0
    %v202 = vadd.f32 %v58, %v201
    %203 = vmatprep.mubr.f32.mxu0 0.0
    %204 = vmatmul.mubr.f32.gmra.mrb[0].mxu0 %v92
    %v205 = vpop.f32.mrb[0].mxu0
    %v206 = vadd.f32 %v54, %v205
    %v207 = vpop.f32.mrb[0].mxu0
    %v208 = vadd.f32 %v58, %v207
    %209 = vmatprep.mubr.f32.mxu0 0.0
    %210 = vmatmul.mubr.f32.gmra.mrb[0].mxu0 %v95
    %v211 = vpop.f32.mrb[0].mxu0
    %v212 = vadd.f32 %v54, %v211
    %v213 = vpop.f32.mrb[0].mxu0
    %v214 = vadd.f32 %v58, %v213
    %215 = vmatprep.mubr.f32.mxu0 0.0
    %216 = vmatmul.mubr.f32.gmra.mrb[0].mxu0 %v98
    %v217 = vpop.f32.mrb[0].mxu0
    %v218 = vadd.f32 %v54, %v217
    %v219 = vpop.f32.mrb[0].mxu0
    %v220 = vadd.f32 %v58, %v219
    %221 = vdwg.mxu0
    %222 = vmatprep.subr.mxu0 %v107
    %223 = vmatpush1.msra.mxu0 %v105
    %224 = vmatprep.subr.mxu0 0.0
    %225 = vmatpush1.msra.mxu0 0.0
    %226 = vmatprep.subr.mxu0 0.0
    %227 = vmatpush1.msra.mxu0 0.0
    %228 = vmatprep.subr.mxu0 0.0
    %229 = vmatpush1.msra.mxu0 0.0
    %230 = vmatprep.subr.mxu0 0.0
    %231 = vmatpush1.msra.mxu0 0.0
    %232 = vmatprep.subr.mxu0 0.0
    %233 = vmatpush1.msra.mxu0 0.0
    %234 = vmatprep.subr.mxu0 0.0
    %235 = vmatpush1.msra.mxu0 0.0
    %236 = vmatprep.subr.mxu0 0.0
    %237 = vmatpush1.msra.mxu0 0.0
    %238 = vmatprep.subr.mxu0 0.0
    %239 = vmatpush1.msra.mxu0 0.0
    %240 = vmatprep.subr.mxu0 0.0
    %241 = vmatpush1.msra.mxu0 0.0
    %242 = vmatprep.subr.mxu0 0.0
    %243 = vmatpush1.msra.mxu0 0.0
    %244 = vmatprep.subr.mxu0 0.0
    %245 = vmatpush1.msra.mxu0 0.0
    %246 = vmatprep.subr.mxu0 0.0
    %247 = vmatpush1.msra.mxu0 0.0
    %248 = vmatprep.subr.mxu0 0.0
    %249 = vmatpush1.msra.mxu0 0.0
    %250 = vmatprep.subr.mxu0 0.0
    %251 = vmatpush1.msra.mxu0 0.0
    %252 = vmatprep.subr.mxu0 0.0
    %253 = vmatpush1.msra.mxu0 0.0
    %254 = vmatprep.subr.mxu0 0.0
    %255 = vmatpush1.msra.mxu0 0.0
    %256 = vmatprep.subr.mxu0 0.0
    %257 = vmatpush1.msra.mxu0 0.0
    %258 = vmatprep.subr.mxu0 0.0
    %259 = vmatpush1.msra.mxu0 0.0
    %260 = vmatprep.subr.mxu0 0.0
    %261 = vmatpush1.msra.mxu0 0.0
    %262 = vmatprep.subr.mxu0 0.0
    %263 = vmatpush1.msra.mxu0 0.0
    %264 = vmatprep.subr.mxu0 0.0
    %265 = vmatpush1.msra.mxu0 0.0
    %266 = vmatprep.subr.mxu0 0.0
    %267 = vmatpush1.msra.mxu0 0.0
    %268 = vmatprep.subr.mxu0 0.0
    %269 = vmatpush1.msra.mxu0 0.0
    %270 = vmatprep.subr.mxu0 0.0
    %271 = vmatpush1.msra.mxu0 0.0
    %272 = vmatprep.subr.mxu0 0.0
    %273 = vmatpush1.msra.mxu0 0.0
    %274 = vmatprep.subr.mxu0 0.0
    %275 = vmatpush1.msra.mxu0 0.0
    %276 = vmatprep.subr.mxu0 0.0
    %277 = vmatpush1.msra.mxu0 0.0
    %278 = vmatprep.subr.mxu0 0.0
    %279 = vmatpush1.msra.mxu0 0.0
    %280 = vmatprep.subr.mxu0 0.0
    %281 = vmatpush1.msra.mxu0 0.0
    %282 = vmatprep.subr.mxu0 0.0
    %283 = vmatpush1.msra.mxu0 0.0
    %284 = vmatprep.subr.mxu0 0.0
    %285 = vmatpush1.msra.mxu0 0.0
    %286 = vmatprep.mubr.f32.mxu0 0.0
    %287 = vmatmul.mubr.f32.gmra.mrb[0].mxu0 %v77
    %v288 = vpop.f32.mrb[0].mxu0
    %v289 = vadd.f32 %v62, %v288
    %v290 = vpop.f32.mrb[0].mxu0
    %v291 = vadd.f32 %v66, %v290
    %292 = vmatprep.mubr.f32.mxu0 0.0
    %293 = vmatmul.mubr.f32.gmra.mrb[0].mxu0 %v80
    %v294 = vpop.f32.mrb[0].mxu0
    %v295 = vadd.f32 %v62, %v294
    %v296 = vpop.f32.mrb[0].mxu0
    %v297 = vadd.f32 %v66, %v296
    %298 = vmatprep.mubr.f32.mxu0 0.0
    %299 = vmatmul.mubr.f32.gmra.mrb[0].mxu0 %v83
    %v300 = vpop.f32.mrb[0].mxu0
    %v301 = vadd.f32 %v62, %v300
    %v302 = vpop.f32.mrb[0].mxu0
    %v303 = vadd.f32 %v66, %v302
    %304 = vmatprep.mubr.f32.mxu0 0.0
    %305 = vmatmul.mubr.f32.gmra.mrb[0].mxu0 %v86
    %v306 = vpop.f32.mrb[0].mxu0
    %v307 = vadd.f32 %v62, %v306
    %v308 = vpop.f32.mrb[0].mxu0
    %v309 = vadd.f32 %v66, %v308
    %310 = vmatprep.mubr.f32.mxu0 0.0
    %311 = vmatmul.mubr.f32.gmra.mrb[0].mxu0 %v89
    %v312 = vpop.f32.mrb[0].mxu0
    %v313 = vadd.f32 %v62, %v312
    %v314 = vpop.f32.mrb[0].mxu0
    %v315 = vadd.f32 %v66, %v314
    %316 = vmatprep.mubr.f32.mxu0 0.0
    %317 = vmatmul.mubr.f32.gmra.mrb[0].mxu0 %v92
    %v318 = vpop.f32.mrb[0].mxu0
    %v319 = vadd.f32 %v62, %v318
    %v320 = vpop.f32.mrb[0].mxu0
    %v321 = vadd.f32 %v66, %v320
    %322 = vmatprep.mubr.f32.mxu0 0.0
    %323 = vmatmul.mubr.f32.gmra.mrb[0].mxu0 %v95
    %v324 = vpop.f32.mrb[0].mxu0
    %v325 = vadd.f32 %v62, %v324
    %v326 = vpop.f32.mrb[0].mxu0
    %v327 = vadd.f32 %v66, %v326
    %328 = vmatprep.mubr.f32.mxu0 0.0
    %329 = vmatmul.mubr.f32.gmra.mrb[0].mxu0 %v98
    %v330 = vpop.f32.mrb[0].mxu0
    %v331 = vadd.f32 %v62, %v330
    %v332 = vpop.f32.mrb[0].mxu0
    %v333 = vadd.f32 %v66, %v332
    %334 = vdwg.mxu0
    %v335 = vld [vmem:[#allocation3] sm:$0xff]
    %v336 = vld [vmem:[#allocation3 + $0x8] sm:$0xff]
    %v337 = vld [vmem:[#allocation3 + $0x10] sm:$0xff]
    %v338 = vld [vmem:[#allocation3 + $0x18] sm:$0xff]
    %v339 = vld [vmem:[#allocation3 + $0x20] sm:$0xff]
    %v340 = vld [vmem:[#allocation3 + $0x28] sm:$0xff]
    %v341 = vld [vmem:[#allocation3 + $0x30] sm:$0xff]
    %v342 = vld [vmem:[#allocation3 + $0x38] sm:$0xff]
    %v343 = vld [vmem:[#allocation3 + $0x40] sm:$0xff]
    %v344 = vld [vmem:[#allocation3 + $0x48] sm:$0xff]
    %v345 = vld [vmem:[#allocation3 + $0x50] sm:$0xff]
    %v346 = vld [vmem:[#allocation3 + $0x58] sm:$0xff]
    %v347 = vld [vmem:[#allocation3 + $0x60] sm:$0xff]
    %v348 = vld [vmem:[#allocation3 + $0x68] sm:$0xff]
    %v349 = vld [vmem:[#allocation3 + $0x70] sm:$0xff]
    %v350 = vld [vmem:[#allocation3 + $0x78] sm:$0xff]
    %v351 = vld [vmem:[#allocation3 + $0x80] sm:$0xff]
    %v352 = vld [vmem:[#allocation3 + $0x88] sm:$0xff]
    %v353 = vld [vmem:[#allocation3 + $0x90] sm:$0xff]
    %v354 = vld [vmem:[#allocation3 + $0x98] sm:$0xff]
    %v355 = vld [vmem:[#allocation3 + $0xa0] sm:$0xff]
    %v356 = vld [vmem:[#allocation3 + $0xa8] sm:$0xff]
    %v357 = vld [vmem:[#allocation3 + $0xb0] sm:$0xff]
    %v358 = vld [vmem:[#allocation3 + $0xb8] sm:$0xff]
    %v359 = vld [vmem:[#allocation3 + $0xc0] sm:$0xff]
    %v360 = vld [vmem:[#allocation3 + $0xc8] sm:$0xff]
    %v361 = vld [vmem:[#allocation3 + $0xd0] sm:$0xff]
    %v362 = vld [vmem:[#allocation3 + $0xd8] sm:$0xff]
    %v363 = vld [vmem:[#allocation3 + $0xe0] sm:$0xff]
    %v364 = vld [vmem:[#allocation3 + $0xe8] sm:$0xff]
    %v365 = vld [vmem:[#allocation3 + $0xf0] sm:$0xff]
    %v366 = vld [vmem:[#allocation3 + $0xf8] sm:$0xff]
    %v367 = vld [vmem:[#allocation3 + $0x100] sm:$0xff]
    %v368 = vld [vmem:[#allocation3 + $0x108] sm:$0xff]
    %v369 = vld [vmem:[#allocation3 + $0x110] sm:$0xff]
    %v370 = vld [vmem:[#allocation3 + $0x118] sm:$0xff]
    %v371 = vld [vmem:[#allocation3 + $0x120] sm:$0xff]
    %v372 = vld [vmem:[#allocation3 + $0x128] sm:$0xff]
    %v373 = vld [vmem:[#allocation3 + $0x130] sm:$0xff]
    %v374 = vld [vmem:[#allocation3 + $0x138] sm:$0xff]
    %v375 = vld [vmem:[#allocation3 + $0x140] sm:$0xff]
    %v376 = vld [vmem:[#allocation3 + $0x148] sm:$0xff]
    %v377 = vld [vmem:[#allocation3 + $0x150] sm:$0xff]
    %v378 = vld [vmem:[#allocation3 + $0x158] sm:$0xff]
    %v379 = vld [vmem:[#allocation3 + $0x160] sm:$0xff]
    %v380 = vld [vmem:[#allocation3 + $0x168] sm:$0xff]
    %v381 = vld [vmem:[#allocation3 + $0x170] sm:$0xff]
    %v382 = vld [vmem:[#allocation3 + $0x178] sm:$0xff]
    %v383 = vld [vmem:[#allocation3 + $0x180] sm:$0xff]
    %v384 = vld [vmem:[#allocation3 + $0x188] sm:$0xff]
    %v385 = vld [vmem:[#allocation3 + $0x190] sm:$0xff]
    %v386 = vld [vmem:[#allocation3 + $0x198] sm:$0xff]
    %v387 = vld [vmem:[#allocation3 + $0x1a0] sm:$0xff]
    %v388 = vld [vmem:[#allocation3 + $0x1a8] sm:$0xff]
    %v389 = vld [vmem:[#allocation3 + $0x1b0] sm:$0xff]
    %v390 = vld [vmem:[#allocation3 + $0x1b8] sm:$0xff]
    %v391 = vld [vmem:[#allocation3 + $0x1c0] sm:$0xff]
    %v392 = vld [vmem:[#allocation3 + $0x1c8] sm:$0xff]
    %v393 = vld [vmem:[#allocation3 + $0x1d0] sm:$0xff]
    %v394 = vld [vmem:[#allocation3 + $0x1d8] sm:$0xff]
    %v395 = vld [vmem:[#allocation3 + $0x1e0] sm:$0xff]
    %v396 = vld [vmem:[#allocation3 + $0x1e8] sm:$0xff]
    %v397 = vld [vmem:[#allocation3 + $0x1f0] sm:$0xff]
    %v398 = vld [vmem:[#allocation3 + $0x1f8] sm:$0xff]
    %399 = vmatprep.subr.mxu0 %v336
    %400 = vmatpush1.msra.mxu0 %v335
    %401 = vmatprep.subr.mxu0 %v340
    %402 = vmatpush1.msra.mxu0 %v339
    %403 = vmatprep.subr.mxu0 %v344
    %404 = vmatpush1.msra.mxu0 %v343
    %405 = vmatprep.subr.mxu0 %v348
    %406 = vmatpush1.msra.mxu0 %v347
    %407 = vmatprep.subr.mxu0 %v352
    %408 = vmatpush1.msra.mxu0 %v351
    %409 = vmatprep.subr.mxu0 %v356
    %410 = vmatpush1.msra.mxu0 %v355
    %411 = vmatprep.subr.mxu0 %v360
    %412 = vmatpush1.msra.mxu0 %v359
    %413 = vmatprep.subr.mxu0 %v364
    %414 = vmatpush1.msra.mxu0 %v363
    %415 = vmatprep.subr.mxu0 %v368
    %416 = vmatpush1.msra.mxu0 %v367
    %417 = vmatprep.subr.mxu0 %v372
    %418 = vmatpush1.msra.mxu0 %v371
    %419 = vmatprep.subr.mxu0 %v376
    %420 = vmatpush1.msra.mxu0 %v375
    %421 = vmatprep.subr.mxu0 %v380
    %422 = vmatpush1.msra.mxu0 %v379
    %423 = vmatprep.subr.mxu0 %v384
    %424 = vmatpush1.msra.mxu0 %v383
    %425 = vmatprep.subr.mxu0 %v388
    %426 = vmatpush1.msra.mxu0 %v387
    %427 = vmatprep.subr.mxu0 %v392
    %428 = vmatpush1.msra.mxu0 %v391
    %429 = vmatprep.subr.mxu0 %v396
    %430 = vmatpush1.msra.mxu0 %v395
    %431 = vmatprep.subr.mxu0 0.0
    %432 = vmatpush1.msra.mxu0 0.0
    %433 = vmatprep.subr.mxu0 0.0
    %434 = vmatpush1.msra.mxu0 0.0
    %435 = vmatprep.subr.mxu0 0.0
    %436 = vmatpush1.msra.mxu0 0.0
    %437 = vmatprep.subr.mxu0 0.0
    %438 = vmatpush1.msra.mxu0 0.0
    %439 = vmatprep.subr.mxu0 0.0
    %440 = vmatpush1.msra.mxu0 0.0
    %441 = vmatprep.subr.mxu0 0.0
    %442 = vmatpush1.msra.mxu0 0.0
    %443 = vmatprep.subr.mxu0 0.0
    %444 = vmatpush1.msra.mxu0 0.0
    %445 = vmatprep.subr.mxu0 0.0
    %446 = vmatpush1.msra.mxu0 0.0
    %447 = vmatprep.subr.mxu0 0.0
    %448 = vmatpush1.msra.mxu0 0.0
    %449 = vmatprep.subr.mxu0 0.0
    %450 = vmatpush1.msra.mxu0 0.0
    %451 = vmatprep.subr.mxu0 0.0
    %452 = vmatpush1.msra.mxu0 0.0
    %453 = vmatprep.subr.mxu0 0.0
    %454 = vmatpush1.msra.mxu0 0.0
    %455 = vmatprep.subr.mxu0 0.0
    %456 = vmatpush1.msra.mxu0 0.0
    %457 = vmatprep.subr.mxu0 0.0
    %458 = vmatpush1.msra.mxu0 0.0
    %459 = vmatprep.subr.mxu0 0.0
    %460 = vmatpush1.msra.mxu0 0.0
    %461 = vmatprep.subr.mxu0 0.0
    %462 = vmatpush1.msra.mxu0 0.0
    %463 = vmatprep.mubr.f32.mxu0 0.0
    %464 = vmatmul.mubr.f32.gmra.mrb[0].mxu0 0.0
    %v465 = vpop.f32.mrb[0].mxu0
    %v466 = vadd.f32 0.0, %v465
    %v467 = vpop.f32.mrb[0].mxu0
    %v468 = vadd.f32 0.0, %v467
    %469 = vdwg.mxu0
    %470 = vmatprep.subr.mxu0 %v338
    %471 = vmatpush1.msra.mxu0 %v337
    %472 = vmatprep.subr.mxu0 %v342
    %473 = vmatpush1.msra.mxu0 %v341
    %474 = vmatprep.subr.mxu0 %v346
    %475 = vmatpush1.msra.mxu0 %v345
    %476 = vmatprep.subr.mxu0 %v350
    %477 = vmatpush1.msra.mxu0 %v349
    %478 = vmatprep.subr.mxu0 %v354
    %479 = vmatpush1.msra.mxu0 %v353
    %480 = vmatprep.subr.mxu0 %v358
    %481 = vmatpush1.msra.mxu0 %v357
    %482 = vmatprep.subr.mxu0 %v362
    %483 = vmatpush1.msra.mxu0 %v361
    %484 = vmatprep.subr.mxu0 %v366
    %485 = vmatpush1.msra.mxu0 %v365
    %486 = vmatprep.subr.mxu0 %v370
    %487 = vmatpush1.msra.mxu0 %v369
    %488 = vmatprep.subr.mxu0 %v374
    %489 = vmatpush1.msra.mxu0 %v373
    %490 = vmatprep.subr.mxu0 %v378
    %491 = vmatpush1.msra.mxu0 %v377
    %492 = vmatprep.subr.mxu0 %v382
    %493 = vmatpush1.msra.mxu0 %v381
    %494 = vmatprep.subr.mxu0 %v386
    %495 = vmatpush1.msra.mxu0 %v385
    %496 = vmatprep.subr.mxu0 %v390
    %497 = vmatpush1.msra.mxu0 %v389
    %498 = vmatprep.subr.mxu0 %v394
    %499 = vmatpush1.msra.mxu0 %v393
    %500 = vmatprep.subr.mxu0 %v398
    %501 = vmatpush1.msra.mxu0 %v397
    %502 = vmatprep.subr.mxu0 0.0
    %503 = vmatpush1.msra.mxu0 0.0
    %504 = vmatprep.subr.mxu0 0.0
    %505 = vmatpush1.msra.mxu0 0.0
    %506 = vmatprep.subr.mxu0 0.0
    %507 = vmatpush1.msra.mxu0 0.0
    %508 = vmatprep.subr.mxu0 0.0
    %509 = vmatpush1.msra.mxu0 0.0
    %510 = vmatprep.subr.mxu0 0.0
    %511 = vmatpush1.msra.mxu0 0.0
    %512 = vmatprep.subr.mxu0 0.0
    %513 = vmatpush1.msra.mxu0 0.0
    %514 = vmatprep.subr.mxu0 0.0
    %515 = vmatpush1.msra.mxu0 0.0
    %516 = vmatprep.subr.mxu0 0.0
    %517 = vmatpush1.msra.mxu0 0.0
    %518 = vmatprep.subr.mxu0 0.0
    %519 = vmatpush1.msra.mxu0 0.0
    %520 = vmatprep.subr.mxu0 0.0
    %521 = vmatpush1.msra.mxu0 0.0
    %522 = vmatprep.subr.mxu0 0.0
    %523 = vmatpush1.msra.mxu0 0.0
    %524 = vmatprep.subr.mxu0 0.0
    %525 = vmatpush1.msra.mxu0 0.0
    %526 = vmatprep.subr.mxu0 0.0
    %527 = vmatpush1.msra.mxu0 0.0
    %528 = vmatprep.subr.mxu0 0.0
    %529 = vmatpush1.msra.mxu0 0.0
    %530 = vmatprep.subr.mxu0 0.0
    %531 = vmatpush1.msra.mxu0 0.0
    %532 = vmatprep.subr.mxu0 0.0
    %533 = vmatpush1.msra.mxu0 0.0
    %534 = vmatprep.mubr.f32.mxu0 0.0
    %535 = vmatmul.mubr.f32.gmra.mrb[0].mxu0 0.0
    %v536 = vpop.f32.mrb[0].mxu0
    %v537 = vadd.f32 0.0, %v536
    %v538 = vpop.f32.mrb[0].mxu0
    %v539 = vadd.f32 0.0, %v538
    %540 = vdwg.mxu0
    %v541 = vadd.f32 %v176, %v466
    %v542 = vadd.f32 %v178, %v468
    %v543 = vadd.f32 %v289, %v537
    %v544 = vadd.f32 %v291, %v539
    %v545 = vxor.u32 %v541, 2147483648
    %v546 = vmul.f32 %v545, 1.442695
    %v547 = vpow.pop %v546
    %v548 = vadd.f32 %v547, 1.0
    %v549 = vrcp.pop %v548
    %v550 = vmul.f32 1.0, %v549
    %v551 = vxor.u32 %v542, 2147483648
    %v552 = vmul.f32 %v551, 1.442695
    %v553 = vpow.pop %v552
    %v554 = vadd.f32 %v553, 1.0
    %v555 = vrcp.pop %v554
    %v556 = vmul.f32 1.0, %v555
    %v557 = vtanh.pop %v543
    %v558 = vxor.u32 %v544, 2147483648
    %v559 = vmul.f32 %v558, 1.442695
    %v560 = vpow.pop %v559
    %v561 = vadd.f32 %v560, 1.0
    %v562 = vrcp.pop %v561
    %v563 = vmul.f32 1.0, %v562
    %v564 = vmul.f32 %v556, 0.0
    %v565 = vmul.f32 %v550, %v557
    %v566 = vadd.f32 %v564, %v565
    %v567 = vtanh.pop %v566
    %v568 = vmul.f32 %v563, %v567
    %569 = vmatprep.subr.mxu0 %v336
    %570 = vmatpush1.msra.mxu0 %v335
    %571 = vmatprep.subr.mxu0 %v340
    %572 = vmatpush1.msra.mxu0 %v339
    %573 = vmatprep.subr.mxu0 %v344
    %574 = vmatpush1.msra.mxu0 %v343
    %575 = vmatprep.subr.mxu0 %v348
    %576 = vmatpush1.msra.mxu0 %v347
    %577 = vmatprep.subr.mxu0 %v352
    %578 = vmatpush1.msra.mxu0 %v351
    %579 = vmatprep.subr.mxu0 %v356
    %580 = vmatpush1.msra.mxu0 %v355
    %581 = vmatprep.subr.mxu0 %v360
    %582 = vmatpush1.msra.mxu0 %v359
    %583 = vmatprep.subr.mxu0 %v364
    %584 = vmatpush1.msra.mxu0 %v363
    %585 = vmatprep.subr.mxu0 %v368
    %586 = vmatpush1.msra.mxu0 %v367
    %587 = vmatprep.subr.mxu0 %v372
    %588 = vmatpush1.msra.mxu0 %v371
    %589 = vmatprep.subr.mxu0 %v376
    %590 = vmatpush1.msra.mxu0 %v375
    %591 = vmatprep.subr.mxu0 %v380
    %592 = vmatpush1.msra.mxu0 %v379
    %593 = vmatprep.subr.mxu0 %v384
    %594 = vmatpush1.msra.mxu0 %v383
    %595 = vmatprep.subr.mxu0 %v388
    %596 = vmatpush1.msra.mxu0 %v387
    %597 = vmatprep.subr.mxu0 %v392
    %598 = vmatpush1.msra.mxu0 %v391
    %599 = vmatprep.subr.mxu0 %v396
    %600 = vmatpush1.msra.mxu0 %v395
    %601 = vmatprep.subr.mxu0 0.0
    %602 = vmatpush1.msra.mxu0 0.0
    %603 = vmatprep.subr.mxu0 0.0
    %604 = vmatpush1.msra.mxu0 0.0
    %605 = vmatprep.subr.mxu0 0.0
    %606 = vmatpush1.msra.mxu0 0.0
    %607 = vmatprep.subr.mxu0 0.0
    %608 = vmatpush1.msra.mxu0 0.0
    %609 = vmatprep.subr.mxu0 0.0
    %610 = vmatpush1.msra.mxu0 0.0
    %611 = vmatprep.subr.mxu0 0.0
    %612 = vmatpush1.msra.mxu0 0.0
    %613 = vmatprep.subr.mxu0 0.0
    %614 = vmatpush1.msra.mxu0 0.0
    %615 = vmatprep.subr.mxu0 0.0
    %616 = vmatpush1.msra.mxu0 0.0
    %617 = vmatprep.subr.mxu0 0.0
    %618 = vmatpush1.msra.mxu0 0.0
    %619 = vmatprep.subr.mxu0 0.0
    %620 = vmatpush1.msra.mxu0 0.0
    %621 = vmatprep.subr.mxu0 0.0
    %622 = vmatpush1.msra.mxu0 0.0
    %623 = vmatprep.subr.mxu0 0.0
    %624 = vmatpush1.msra.mxu0 0.0
    %625 = vmatprep.subr.mxu0 0.0
    %626 = vmatpush1.msra.mxu0 0.0
    %627 = vmatprep.subr.mxu0 0.0
    %628 = vmatpush1.msra.mxu0 0.0
    %629 = vmatprep.subr.mxu0 0.0
    %630 = vmatpush1.msra.mxu0 0.0
    %631 = vmatprep.subr.mxu0 0.0
    %632 = vmatpush1.msra.mxu0 0.0
    %633 = vmatprep.mubr.f32.mxu0 0.0
    %634 = vmatmul.mubr.f32.gmra.mrb[0].mxu0 %v568
    %v635 = vpop.f32.mrb[0].mxu0
    %v636 = vadd.f32 0.0, %v635
    %v637 = vpop.f32.mrb[0].mxu0
    %v638 = vadd.f32 0.0, %v637
    %639 = vdwg.mxu0
    %640 = vmatprep.subr.mxu0 %v338
    %641 = vmatpush1.msra.mxu0 %v337
    %642 = vmatprep.subr.mxu0 %v342
    %643 = vmatpush1.msra.mxu0 %v341
    %644 = vmatprep.subr.mxu0 %v346
    %645 = vmatpush1.msra.mxu0 %v345
    %646 = vmatprep.subr.mxu0 %v350
    %647 = vmatpush1.msra.mxu0 %v349
    %648 = vmatprep.subr.mxu0 %v354
    %649 = vmatpush1.msra.mxu0 %v353
    %650 = vmatprep.subr.mxu0 %v358
    %651 = vmatpush1.msra.mxu0 %v357
    %652 = vmatprep.subr.mxu0 %v362
    %653 = vmatpush1.msra.mxu0 %v361
    %654 = vmatprep.subr.mxu0 %v366
    %655 = vmatpush1.msra.mxu0 %v365
    %656 = vmatprep.subr.mxu0 %v370
    %657 = vmatpush1.msra.mxu0 %v369
    %658 = vmatprep.subr.mxu0 %v374
    %659 = vmatpush1.msra.mxu0 %v373
    %660 = vmatprep.subr.mxu0 %v378
    %661 = vmatpush1.msra.mxu0 %v377
    %662 = vmatprep.subr.mxu0 %v382
    %663 = vmatpush1.msra.mxu0 %v381
    %664 = vmatprep.subr.mxu0 %v386
    %665 = vmatpush1.msra.mxu0 %v385
    %666 = vmatprep.subr.mxu0 %v390
    %667 = vmatpush1.msra.mxu0 %v389
    %668 = vmatprep.subr.mxu0 %v394
    %669 = vmatpush1.msra.mxu0 %v393
    %670 = vmatprep.subr.mxu0 %v398
    %671 = vmatpush1.msra.mxu0 %v397
    %672 = vmatprep.subr.mxu0 0.0
    %673 = vmatpush1.msra.mxu0 0.0
    %674 = vmatprep.subr.mxu0 0.0
    %675 = vmatpush1.msra.mxu0 0.0
    %676 = vmatprep.subr.mxu0 0.0
    %677 = vmatpush1.msra.mxu0 0.0
    %678 = vmatprep.subr.mxu0 0.0
    %679 = vmatpush1.msra.mxu0 0.0
    %680 = vmatprep.subr.mxu0 0.0
    %681 = vmatpush1.msra.mxu0 0.0
    %682 = vmatprep.subr.mxu0 0.0
    %683 = vmatpush1.msra.mxu0 0.0
    %684 = vmatprep.subr.mxu0 0.0
    %685 = vmatpush1.msra.mxu0 0.0
    %686 = vmatprep.subr.mxu0 0.0
    %687 = vmatpush1.msra.mxu0 0.0
    %688 = vmatprep.subr.mxu0 0.0
    %689 = vmatpush1.msra.mxu0 0.0
    %690 = vmatprep.subr.mxu0 0.0
    %691 = vmatpush1.msra.mxu0 0.0
    %692 = vmatprep.subr.mxu0 0.0
    %693 = vmatpush1.msra.mxu0 0.0
    %694 = vmatprep.subr.mxu0 0.0
    %695 = vmatpush1.msra.mxu0 0.0
    %696 = vmatprep.subr.mxu0 0.0
    %697 = vmatpush1.msra.mxu0 0.0
    %698 = vmatprep.subr.mxu0 0.0
    %699 = vmatpush1.msra.mxu0 0.0
    %700 = vmatprep.subr.mxu0 0.0
    %701 = vmatpush1.msra.mxu0 0.0
    %702 = vmatprep.subr.mxu0 0.0
    %703 = vmatpush1.msra.mxu0 0.0
    %704 = vmatprep.mubr.f32.mxu0 0.0
    %705 = vmatmul.mubr.f32.gmra.mrb[0].mxu0 %v568
    %v706 = vpop.f32.mrb[0].mxu0
    %v707 = vadd.f32 0.0, %v706
    %v708 = vpop.f32.mrb[0].mxu0
    %v709 = vadd.f32 0.0, %v708
    %710 = vdwg.mxu0
    %v711 = vadd.f32 %v182, %v636
    %v712 = vadd.f32 %v184, %v638
    %v713 = vadd.f32 %v295, %v707
    %v714 = vadd.f32 %v297, %v709
    %v715 = vxor.u32 %v711, 2147483648
    %v716 = vmul.f32 %v715, 1.442695
    %v717 = vpow.pop %v716
    %v718 = vadd.f32 %v717, 1.0
    %v719 = vrcp.pop %v718
    %v720 = vmul.f32 1.0, %v719
    %v721 = vxor.u32 %v712, 2147483648
    %v722 = vmul.f32 %v721, 1.442695
    %v723 = vpow.pop %v722
    %v724 = vadd.f32 %v723, 1.0
    %v725 = vrcp.pop %v724
    %v726 = vmul.f32 1.0, %v725
    %v727 = vtanh.pop %v713
    %v728 = vxor.u32 %v714, 2147483648
    %v729 = vmul.f32 %v728, 1.442695
    %v730 = vpow.pop %v729
    %v731 = vadd.f32 %v730, 1.0
    %v732 = vrcp.pop %v731
    %v733 = vmul.f32 1.0, %v732
    %v734 = vmul.f32 %v726, %v566
    %v735 = vmul.f32 %v720, %v727
    %v736 = vadd.f32 %v734, %v735
    %v737 = vtanh.pop %v736
    %v738 = vmul.f32 %v733, %v737
    %739 = vmatprep.subr.mxu0 %v336
    %740 = vmatpush1.msra.mxu0 %v335
    %741 = vmatprep.subr.mxu0 %v340
    %742 = vmatpush1.msra.mxu0 %v339
    %743 = vmatprep.subr.mxu0 %v344
    %744 = vmatpush1.msra.mxu0 %v343
    %745 = vmatprep.subr.mxu0 %v348
    %746 = vmatpush1.msra.mxu0 %v347
    %747 = vmatprep.subr.mxu0 %v352
    %748 = vmatpush1.msra.mxu0 %v351
    %749 = vmatprep.subr.mxu0 %v356
    %750 = vmatpush1.msra.mxu0 %v355
    %751 = vmatprep.subr.mxu0 %v360
    %752 = vmatpush1.msra.mxu0 %v359
    %753 = vmatprep.subr.mxu0 %v364
    %754 = vmatpush1.msra.mxu0 %v363
    %755 = vmatprep.subr.mxu0 %v368
    %756 = vmatpush1.msra.mxu0 %v367
    %757 = vmatprep.subr.mxu0 %v372
    %758 = vmatpush1.msra.mxu0 %v371
    %759 = vmatprep.subr.mxu0 %v376
    %760 = vmatpush1.msra.mxu0 %v375
    %761 = vmatprep.subr.mxu0 %v380
    %762 = vmatpush1.msra.mxu0 %v379
    %763 = vmatprep.subr.mxu0 %v384
    %764 = vmatpush1.msra.mxu0 %v383
    %765 = vmatprep.subr.mxu0 %v388
    %766 = vmatpush1.msra.mxu0 %v387
    %767 = vmatprep.subr.mxu0 %v392
    %768 = vmatpush1.msra.mxu0 %v391
    %769 = vmatprep.subr.mxu0 %v396
    %770 = vmatpush1.msra.mxu0 %v395
    %771 = vmatprep.subr.mxu0 0.0
    %772 = vmatpush1.msra.mxu0 0.0
    %773 = vmatprep.subr.mxu0 0.0
    %774 = vmatpush1.msra.mxu0 0.0
    %775 = vmatprep.subr.mxu0 0.0
    %776 = vmatpush1.msra.mxu0 0.0
    %777 = vmatprep.subr.mxu0 0.0
    %778 = vmatpush1.msra.mxu0 0.0
    %779 = vmatprep.subr.mxu0 0.0
    %780 = vmatpush1.msra.mxu0 0.0
    %781 = vmatprep.subr.mxu0 0.0
    %782 = vmatpush1.msra.mxu0 0.0
    %783 = vmatprep.subr.mxu0 0.0
    %784 = vmatpush1.msra.mxu0 0.0
    %785 = vmatprep.subr.mxu0 0.0
    %786 = vmatpush1.msra.mxu0 0.0
    %787 = vmatprep.subr.mxu0 0.0
    %788 = vmatpush1.msra.mxu0 0.0
    %789 = vmatprep.subr.mxu0 0.0
    %790 = vmatpush1.msra.mxu0 0.0
    %791 = vmatprep.subr.mxu0 0.0
    %792 = vmatpush1.msra.mxu0 0.0
    %793 = vmatprep.subr.mxu0 0.0
    %794 = vmatpush1.msra.mxu0 0.0
    %795 = vmatprep.subr.mxu0 0.0
    %796 = vmatpush1.msra.mxu0 0.0
    %797 = vmatprep.subr.mxu0 0.0
    %798 = vmatpush1.msra.mxu0 0.0
    %799 = vmatprep.subr.mxu0 0.0
    %800 = vmatpush1.msra.mxu0 0.0
    %801 = vmatprep.subr.mxu0 0.0
    %802 = vmatpush1.msra.mxu0 0.0
    %803 = vmatprep.mubr.f32.mxu0 0.0
    %804 = vmatmul.mubr.f32.gmra.mrb[0].mxu0 %v738
    %v805 = vpop.f32.mrb[0].mxu0
    %v806 = vadd.f32 0.0, %v805
    %v807 = vpop.f32.mrb[0].mxu0
    %v808 = vadd.f32 0.0, %v807
    %809 = vdwg.mxu0
    %810 = vmatprep.subr.mxu0 %v338
    %811 = vmatpush1.msra.mxu0 %v337
    %812 = vmatprep.subr.mxu0 %v342
    %813 = vmatpush1.msra.mxu0 %v341
    %814 = vmatprep.subr.mxu0 %v346
    %815 = vmatpush1.msra.mxu0 %v345
    %816 = vmatprep.subr.mxu0 %v350
    %817 = vmatpush1.msra.mxu0 %v349
    %818 = vmatprep.subr.mxu0 %v354
    %819 = vmatpush1.msra.mxu0 %v353
    %820 = vmatprep.subr.mxu0 %v358
    %821 = vmatpush1.msra.mxu0 %v357
    %822 = vmatprep.subr.mxu0 %v362
    %823 = vmatpush1.msra.mxu0 %v361
    %824 = vmatprep.subr.mxu0 %v366
    %825 = vmatpush1.msra.mxu0 %v365
    %826 = vmatprep.subr.mxu0 %v370
    %827 = vmatpush1.msra.mxu0 %v369
    %828 = vmatprep.subr.mxu0 %v374
    %829 = vmatpush1.msra.mxu0 %v373
    %830 = vmatprep.subr.mxu0 %v378
    %831 = vmatpush1.msra.mxu0 %v377
    %832 = vmatprep.subr.mxu0 %v382
    %833 = vmatpush1.msra.mxu0 %v381
    %834 = vmatprep.subr.mxu0 %v386
    %835 = vmatpush1.msra.mxu0 %v385
    %836 = vmatprep.subr.mxu0 %v390
    %837 = vmatpush1.msra.mxu0 %v389
    %838 = vmatprep.subr.mxu0 %v394
    %839 = vmatpush1.msra.mxu0 %v393
    %840 = vmatprep.subr.mxu0 %v398
    %841 = vmatpush1.msra.mxu0 %v397
    %842 = vmatprep.subr.mxu0 0.0
    %843 = vmatpush1.msra.mxu0 0.0
    %844 = vmatprep.subr.mxu0 0.0
    %845 = vmatpush1.msra.mxu0 0.0
    %846 = vmatprep.subr.mxu0 0.0
    %847 = vmatpush1.msra.mxu0 0.0
    %848 = vmatprep.subr.mxu0 0.0
    %849 = vmatpush1.msra.mxu0 0.0
    %850 = vmatprep.subr.mxu0 0.0
    %851 = vmatpush1.msra.mxu0 0.0
    %852 = vmatprep.subr.mxu0 0.0
    %853 = vmatpush1.msra.mxu0 0.0
    %854 = vmatprep.subr.mxu0 0.0
    %855 = vmatpush1.msra.mxu0 0.0
    %856 = vmatprep.subr.mxu0 0.0
    %857 = vmatpush1.msra.mxu0 0.0
    %858 = vmatprep.subr.mxu0 0.0
    %859 = vmatpush1.msra.mxu0 0.0
    %860 = vmatprep.subr.mxu0 0.0
    %861 = vmatpush1.msra.mxu0 0.0
    %862 = vmatprep.subr.mxu0 0.0
    %863 = vmatpush1.msra.mxu0 0.0
    %864 = vmatprep.subr.mxu0 0.0
    %865 = vmatpush1.msra.mxu0 0.0
    %866 = vmatprep.subr.mxu0 0.0
    %867 = vmatpush1.msra.mxu0 0.0
    %868 = vmatprep.subr.mxu0 0.0
    %869 = vmatpush1.msra.mxu0 0.0
    %870 = vmatprep.subr.mxu0 0.0
    %871 = vmatpush1.msra.mxu0 0.0
    %872 = vmatprep.subr.mxu0 0.0
    %873 = vmatpush1.msra.mxu0 0.0
    %874 = vmatprep.mubr.f32.mxu0 0.0
    %875 = vmatmul.mubr.f32.gmra.mrb[0].mxu0 %v738
    %v876 = vpop.f32.mrb[0].mxu0
    %v877 = vadd.f32 0.0, %v876
    %v878 = vpop.f32.mrb[0].mxu0
    %v879 = vadd.f32 0.0, %v878
    %880 = vdwg.mxu0
    %v881 = vadd.f32 %v188, %v806
    %v882 = vadd.f32 %v190, %v808
    %v883 = vadd.f32 %v301, %v877
    %v884 = vadd.f32 %v303, %v879
    %v885 = vxor.u32 %v881, 2147483648
    %v886 = vmul.f32 %v885, 1.442695
    %v887 = vpow.pop %v886
    %v888 = vadd.f32 %v887, 1.0
    %v889 = vrcp.pop %v888
    %v890 = vmul.f32 1.0, %v889
    %v891 = vxor.u32 %v882, 2147483648
    %v892 = vmul.f32 %v891, 1.442695
    %v893 = vpow.pop %v892
    %v894 = vadd.f32 %v893, 1.0
    %v895 = vrcp.pop %v894
    %v896 = vmul.f32 1.0, %v895
    %v897 = vtanh.pop %v883
    %v898 = vxor.u32 %v884, 2147483648
    %v899 = vmul.f32 %v898, 1.442695
    %v900 = vpow.pop %v899
    %v901 = vadd.f32 %v900, 1.0
    %v902 = vrcp.pop %v901
    %v903 = vmul.f32 1.0, %v902
    %v904 = vmul.f32 %v896, %v736
    %v905 = vmul.f32 %v890, %v897
    %v906 = vadd.f32 %v904, %v905
    %v907 = vtanh.pop %v906
    %v908 = vmul.f32 %v903, %v907
    %909 = vmatprep.subr.mxu0 %v336
    %910 = vmatpush1.msra.mxu0 %v335
    %911 = vmatprep.subr.mxu0 %v340
    %912 = vmatpush1.msra.mxu0 %v339
    %913 = vmatprep.subr.mxu0 %v344
    %914 = vmatpush1.msra.mxu0 %v343
    %915 = vmatprep.subr.mxu0 %v348
    %916 = vmatpush1.msra.mxu0 %v347
    %917 = vmatprep.subr.mxu0 %v352
    %918 = vmatpush1.msra.mxu0 %v351
    %919 = vmatprep.subr.mxu0 %v356
    %920 = vmatpush1.msra.mxu0 %v355
    %921 = vmatprep.subr.mxu0 %v360
    %922 = vmatpush1.msra.mxu0 %v359
    %923 = vmatprep.subr.mxu0 %v364
    %924 = vmatpush1.msra.mxu0 %v363
    %925 = vmatprep.subr.mxu0 %v368
    %926 = vmatpush1.msra.mxu0 %v367
    %927 = vmatprep.subr.mxu0 %v372
    %928 = vmatpush1.msra.mxu0 %v371
    %929 = vmatprep.subr.mxu0 %v376
    %930 = vmatpush1.msra.mxu0 %v375
    %931 = vmatprep.subr.mxu0 %v380
    %932 = vmatpush1.msra.mxu0 %v379
    %933 = vmatprep.subr.mxu0 %v384
    %934 = vmatpush1.msra.mxu0 %v383
    %935 = vmatprep.subr.mxu0 %v388
    %936 = vmatpush1.msra.mxu0 %v387
    %937 = vmatprep.subr.mxu0 %v392
    %938 = vmatpush1.msra.mxu0 %v391
    %939 = vmatprep.subr.mxu0 %v396
    %940 = vmatpush1.msra.mxu0 %v395
    %941 = vmatprep.subr.mxu0 0.0
    %942 = vmatpush1.msra.mxu0 0.0
    %943 = vmatprep.subr.mxu0 0.0
    %944 = vmatpush1.msra.mxu0 0.0
    %945 = vmatprep.subr.mxu0 0.0
    %946 = vmatpush1.msra.mxu0 0.0
    %947 = vmatprep.subr.mxu0 0.0
    %948 = vmatpush1.msra.mxu0 0.0
    %949 = vmatprep.subr.mxu0 0.0
    %950 = vmatpush1.msra.mxu0 0.0
    %951 = vmatprep.subr.mxu0 0.0
    %952 = vmatpush1.msra.mxu0 0.0
    %953 = vmatprep.subr.mxu0 0.0
    %954 = vmatpush1.msra.mxu0 0.0
    %955 = vmatprep.subr.mxu0 0.0
    %956 = vmatpush1.msra.mxu0 0.0
    %957 = vmatprep.subr.mxu0 0.0
    %958 = vmatpush1.msra.mxu0 0.0
    %959 = vmatprep.subr.mxu0 0.0
    %960 = vmatpush1.msra.mxu0 0.0
    %961 = vmatprep.subr.mxu0 0.0
    %962 = vmatpush1.msra.mxu0 0.0
    %963 = vmatprep.subr.mxu0 0.0
    %964 = vmatpush1.msra.mxu0 0.0
    %965 = vmatprep.subr.mxu0 0.0
    %966 = vmatpush1.msra.mxu0 0.0
    %967 = vmatprep.subr.mxu0 0.0
    %968 = vmatpush1.msra.mxu0 0.0
    %969 = vmatprep.subr.mxu0 0.0
    %970 = vmatpush1.msra.mxu0 0.0
    %971 = vmatprep.subr.mxu0 0.0
    %972 = vmatpush1.msra.mxu0 0.0
    %973 = vmatprep.mubr.f32.mxu0 0.0
    %974 = vmatmul.mubr.f32.gmra.mrb[0].mxu0 %v908
    %v975 = vpop.f32.mrb[0].mxu0
    %v976 = vadd.f32 0.0, %v975
    %v977 = vpop.f32.mrb[0].mxu0
    %v978 = vadd.f32 0.0, %v977
    %979 = vdwg.mxu0
    %980 = vmatprep.subr.mxu0 %v338
    %981 = vmatpush1.msra.mxu0 %v337
    %982 = vmatprep.subr.mxu0 %v342
    %983 = vmatpush1.msra.mxu0 %v341
    %984 = vmatprep.subr.mxu0 %v346
    %985 = vmatpush1.msra.mxu0 %v345
    %986 = vmatprep.subr.mxu0 %v350
    %987 = vmatpush1.msra.mxu0 %v349
    %988 = vmatprep.subr.mxu0 %v354
    %989 = vmatpush1.msra.mxu0 %v353
    %990 = vmatprep.subr.mxu0 %v358
    %991 = vmatpush1.msra.mxu0 %v357
    %992 = vmatprep.subr.mxu0 %v362
    %993 = vmatpush1.msra.mxu0 %v361
    %994 = vmatprep.subr.mxu0 %v366
    %995 = vmatpush1.msra.mxu0 %v365
    %996 = vmatprep.subr.mxu0 %v370
    %997 = vmatpush1.msra.mxu0 %v369
    %998 = vmatprep.subr.mxu0 %v374
    %999 = vmatpush1.msra.mxu0 %v373
    %1000 = vmatprep.subr.mxu0 %v378
    %1001 = vmatpush1.msra.mxu0 %v377
    %1002 = vmatprep.subr.mxu0 %v382
    %1003 = vmatpush1.msra.mxu0 %v381
    %1004 = vmatprep.subr.mxu0 %v386
    %1005 = vmatpush1.msra.mxu0 %v385
    %1006 = vmatprep.subr.mxu0 %v390
    %1007 = vmatpush1.msra.mxu0 %v389
    %1008 = vmatprep.subr.mxu0 %v394
    %1009 = vmatpush1.msra.mxu0 %v393
    %1010 = vmatprep.subr.mxu0 %v398
    %1011 = vmatpush1.msra.mxu0 %v397
    %1012 = vmatprep.subr.mxu0 0.0
    %1013 = vmatpush1.msra.mxu0 0.0
    %1014 = vmatprep.subr.mxu0 0.0
    %1015 = vmatpush1.msra.mxu0 0.0
    %1016 = vmatprep.subr.mxu0 0.0
    %1017 = vmatpush1.msra.mxu0 0.0
    %1018 = vmatprep.subr.mxu0 0.0
    %1019 = vmatpush1.msra.mxu0 0.0
    %1020 = vmatprep.subr.mxu0 0.0
    %1021 = vmatpush1.msra.mxu0 0.0
    %1022 = vmatprep.subr.mxu0 0.0
    %1023 = vmatpush1.msra.mxu0 0.0
    %1024 = vmatprep.subr.mxu0 0.0
    %1025 = vmatpush1.msra.mxu0 0.0
    %1026 = vmatprep.subr.mxu0 0.0
    %1027 = vmatpush1.msra.mxu0 0.0
    %1028 = vmatprep.subr.mxu0 0.0
    %1029 = vmatpush1.msra.mxu0 0.0
    %1030 = vmatprep.subr.mxu0 0.0
    %1031 = vmatpush1.msra.mxu0 0.0
    %1032 = vmatprep.subr.mxu0 0.0
    %1033 = vmatpush1.msra.mxu0 0.0
    %1034 = vmatprep.subr.mxu0 0.0
    %1035 = vmatpush1.msra.mxu0 0.0
    %1036 = vmatprep.subr.mxu0 0.0
    %1037 = vmatpush1.msra.mxu0 0.0
    %1038 = vmatprep.subr.mxu0 0.0
    %1039 = vmatpush1.msra.mxu0 0.0
    %1040 = vmatprep.subr.mxu0 0.0
    %1041 = vmatpush1.msra.mxu0 0.0
    %1042 = vmatprep.subr.mxu0 0.0
    %1043 = vmatpush1.msra.mxu0 0.0
    %1044 = vmatprep.mubr.f32.mxu0 0.0
    %1045 = vmatmul.mubr.f32.gmra.mrb[0].mxu0 %v908
    %v1046 = vpop.f32.mrb[0].mxu0
    %v1047 = vadd.f32 0.0, %v1046
    %v1048 = vpop.f32.mrb[0].mxu0
    %v1049 = vadd.f32 0.0, %v1048
    %1050 = vdwg.mxu0
    %v1051 = vadd.f32 %v194, %v976
    %v1052 = vadd.f32 %v196, %v978
    %v1053 = vadd.f32 %v307, %v1047
    %v1054 = vadd.f32 %v309, %v1049
    %v1055 = vxor.u32 %v1051, 2147483648
    %v1056 = vmul.f32 %v1055, 1.442695
    %v1057 = vpow.pop %v1056
    %v1058 = vadd.f32 %v1057, 1.0
    %v1059 = vrcp.pop %v1058
    %v1060 = vmul.f32 1.0, %v1059
    %v1061 = vxor.u32 %v1052, 2147483648
    %v1062 = vmul.f32 %v1061, 1.442695
    %v1063 = vpow.pop %v1062
    %v1064 = vadd.f32 %v1063, 1.0
    %v1065 = vrcp.pop %v1064
    %v1066 = vmul.f32 1.0, %v1065
    %v1067 = vtanh.pop %v1053
    %v1068 = vxor.u32 %v1054, 2147483648
    %v1069 = vmul.f32 %v1068, 1.442695
    %v1070 = vpow.pop %v1069
    %v1071 = vadd.f32 %v1070, 1.0
    %v1072 = vrcp.pop %v1071
    %v1073 = vmul.f32 1.0, %v1072
    %v1074 = vmul.f32 %v1066, %v906
    %v1075 = vmul.f32 %v1060, %v1067
    %v1076 = vadd.f32 %v1074, %v1075
    %v1077 = vtanh.pop %v1076
    %v1078 = vmul.f32 %v1073, %v1077
    %1079 = vmatprep.subr.mxu0 %v336
    %1080 = vmatpush1.msra.mxu0 %v335
    %1081 = vmatprep.subr.mxu0 %v340
    %1082 = vmatpush1.msra.mxu0 %v339
    %1083 = vmatprep.subr.mxu0 %v344
    %1084 = vmatpush1.msra.mxu0 %v343
    %1085 = vmatprep.subr.mxu0 %v348
    %1086 = vmatpush1.msra.mxu0 %v347
    %1087 = vmatprep.subr.mxu0 %v352
    %1088 = vmatpush1.msra.mxu0 %v351
    %1089 = vmatprep.subr.mxu0 %v356
    %1090 = vmatpush1.msra.mxu0 %v355
    %1091 = vmatprep.subr.mxu0 %v360
    %1092 = vmatpush1.msra.mxu0 %v359
    %1093 = vmatprep.subr.mxu0 %v364
    %1094 = vmatpush1.msra.mxu0 %v363
    %1095 = vmatprep.subr.mxu0 %v368
    %1096 = vmatpush1.msra.mxu0 %v367
    %1097 = vmatprep.subr.mxu0 %v372
    %1098 = vmatpush1.msra.mxu0 %v371
    %1099 = vmatprep.subr.mxu0 %v376
    %1100 = vmatpush1.msra.mxu0 %v375
    %1101 = vmatprep.subr.mxu0 %v380
    %1102 = vmatpush1.msra.mxu0 %v379
    %1103 = vmatprep.subr.mxu0 %v384
    %1104 = vmatpush1.msra.mxu0 %v383
    %1105 = vmatprep.subr.mxu0 %v388
    %1106 = vmatpush1.msra.mxu0 %v387
    %1107 = vmatprep.subr.mxu0 %v392
    %1108 = vmatpush1.msra.mxu0 %v391
    %1109 = vmatprep.subr.mxu0 %v396
    %1110 = vmatpush1.msra.mxu0 %v395
    %1111 = vmatprep.subr.mxu0 0.0
    %1112 = vmatpush1.msra.mxu0 0.0
    %1113 = vmatprep.subr.mxu0 0.0
    %1114 = vmatpush1.msra.mxu0 0.0
    %1115 = vmatprep.subr.mxu0 0.0
    %1116 = vmatpush1.msra.mxu0 0.0
    %1117 = vmatprep.subr.mxu0 0.0
    %1118 = vmatpush1.msra.mxu0 0.0
    %1119 = vmatprep.subr.mxu0 0.0
    %1120 = vmatpush1.msra.mxu0 0.0
    %1121 = vmatprep.subr.mxu0 0.0
    %1122 = vmatpush1.msra.mxu0 0.0
    %1123 = vmatprep.subr.mxu0 0.0
    %1124 = vmatpush1.msra.mxu0 0.0
    %1125 = vmatprep.subr.mxu0 0.0
    %1126 = vmatpush1.msra.mxu0 0.0
    %1127 = vmatprep.subr.mxu0 0.0
    %1128 = vmatpush1.msra.mxu0 0.0
    %1129 = vmatprep.subr.mxu0 0.0
    %1130 = vmatpush1.msra.mxu0 0.0
    %1131 = vmatprep.subr.mxu0 0.0
    %1132 = vmatpush1.msra.mxu0 0.0
    %1133 = vmatprep.subr.mxu0 0.0
    %1134 = vmatpush1.msra.mxu0 0.0
    %1135 = vmatprep.subr.mxu0 0.0
    %1136 = vmatpush1.msra.mxu0 0.0
    %1137 = vmatprep.subr.mxu0 0.0
    %1138 = vmatpush1.msra.mxu0 0.0
    %1139 = vmatprep.subr.mxu0 0.0
    %1140 = vmatpush1.msra.mxu0 0.0
    %1141 = vmatprep.subr.mxu0 0.0
    %1142 = vmatpush1.msra.mxu0 0.0
    %1143 = vmatprep.mubr.f32.mxu0 0.0
    %1144 = vmatmul.mubr.f32.gmra.mrb[0].mxu0 %v1078
    %v1145 = vpop.f32.mrb[0].mxu0
    %v1146 = vadd.f32 0.0, %v1145
    %v1147 = vpop.f32.mrb[0].mxu0
    %v1148 = vadd.f32 0.0, %v1147
    %1149 = vdwg.mxu0
    %1150 = vmatprep.subr.mxu0 %v338
    %1151 = vmatpush1.msra.mxu0 %v337
    %1152 = vmatprep.subr.mxu0 %v342
    %1153 = vmatpush1.msra.mxu0 %v341
    %1154 = vmatprep.subr.mxu0 %v346
    %1155 = vmatpush1.msra.mxu0 %v345
    %1156 = vmatprep.subr.mxu0 %v350
    %1157 = vmatpush1.msra.mxu0 %v349
    %1158 = vmatprep.subr.mxu0 %v354
    %1159 = vmatpush1.msra.mxu0 %v353
    %1160 = vmatprep.subr.mxu0 %v358
    %1161 = vmatpush1.msra.mxu0 %v357
    %1162 = vmatprep.subr.mxu0 %v362
    %1163 = vmatpush1.msra.mxu0 %v361
    %1164 = vmatprep.subr.mxu0 %v366
    %1165 = vmatpush1.msra.mxu0 %v365
    %1166 = vmatprep.subr.mxu0 %v370
    %1167 = vmatpush1.msra.mxu0 %v369
    %1168 = vmatprep.subr.mxu0 %v374
    %1169 = vmatpush1.msra.mxu0 %v373
    %1170 = vmatprep.subr.mxu0 %v378
    %1171 = vmatpush1.msra.mxu0 %v377
    %1172 = vmatprep.subr.mxu0 %v382
    %1173 = vmatpush1.msra.mxu0 %v381
    %1174 = vmatprep.subr.mxu0 %v386
    %1175 = vmatpush1.msra.mxu0 %v385
    %1176 = vmatprep.subr.mxu0 %v390
    %1177 = vmatpush1.msra.mxu0 %v389
    %1178 = vmatprep.subr.mxu0 %v394
    %1179 = vmatpush1.msra.mxu0 %v393
    %1180 = vmatprep.subr.mxu0 %v398
    %1181 = vmatpush1.msra.mxu0 %v397
    %1182 = vmatprep.subr.mxu0 0.0
    %1183 = vmatpush1.msra.mxu0 0.0
    %1184 = vmatprep.subr.mxu0 0.0
    %1185 = vmatpush1.msra.mxu0 0.0
    %1186 = vmatprep.subr.mxu0 0.0
    %1187 = vmatpush1.msra.mxu0 0.0
    %1188 = vmatprep.subr.mxu0 0.0
    %1189 = vmatpush1.msra.mxu0 0.0
    %1190 = vmatprep.subr.mxu0 0.0
    %1191 = vmatpush1.msra.mxu0 0.0
    %1192 = vmatprep.subr.mxu0 0.0
    %1193 = vmatpush1.msra.mxu0 0.0
    %1194 = vmatprep.subr.mxu0 0.0
    %1195 = vmatpush1.msra.mxu0 0.0
    %1196 = vmatprep.subr.mxu0 0.0
    %1197 = vmatpush1.msra.mxu0 0.0
    %1198 = vmatprep.subr.mxu0 0.0
    %1199 = vmatpush1.msra.mxu0 0.0
    %1200 = vmatprep.subr.mxu0 0.0
    %1201 = vmatpush1.msra.mxu0 0.0
    %1202 = vmatprep.subr.mxu0 0.0
    %1203 = vmatpush1.msra.mxu0 0.0
    %1204 = vmatprep.subr.mxu0 0.0
    %1205 = vmatpush1.msra.mxu0 0.0
    %1206 = vmatprep.subr.mxu0 0.0
    %1207 = vmatpush1.msra.mxu0 0.0
    %1208 = vmatprep.subr.mxu0 0.0
    %1209 = vmatpush1.msra.mxu0 0.0
    %1210 = vmatprep.subr.mxu0 0.0
    %1211 = vmatpush1.msra.mxu0 0.0
    %1212 = vmatprep.subr.mxu0 0.0
    %1213 = vmatpush1.msra.mxu0 0.0
    %1214 = vmatprep.mubr.f32.mxu0 0.0
    %1215 = vmatmul.mubr.f32.gmra.mrb[0].mxu0 %v1078
    %v1216 = vpop.f32.mrb[0].mxu0
    %v1217 = vadd.f32 0.0, %v1216
    %v1218 = vpop.f32.mrb[0].mxu0
    %v1219 = vadd.f32 0.0, %v1218
    %1220 = vdwg.mxu0
    %v1221 = vadd.f32 %v200, %v1146
    %v1222 = vadd.f32 %v202, %v1148
    %v1223 = vadd.f32 %v313, %v1217
    %v1224 = vadd.f32 %v315, %v1219
    %v1225 = vxor.u32 %v1221, 2147483648
    %v1226 = vmul.f32 %v1225, 1.442695
    %v1227 = vpow.pop %v1226
    %v1228 = vadd.f32 %v1227, 1.0
    %v1229 = vrcp.pop %v1228
    %v1230 = vmul.f32 1.0, %v1229
    %v1231 = vxor.u32 %v1222, 2147483648
    %v1232 = vmul.f32 %v1231, 1.442695
    %v1233 = vpow.pop %v1232
    %v1234 = vadd.f32 %v1233, 1.0
    %v1235 = vrcp.pop %v1234
    %v1236 = vmul.f32 1.0, %v1235
    %v1237 = vtanh.pop %v1223
    %v1238 = vxor.u32 %v1224, 2147483648
    %v1239 = vmul.f32 %v1238, 1.442695
    %v1240 = vpow.pop %v1239
    %v1241 = vadd.f32 %v1240, 1.0
    %v1242 = vrcp.pop %v1241
    %v1243 = vmul.f32 1.0, %v1242
    %v1244 = vmul.f32 %v1236, %v1076
    %v1245 = vmul.f32 %v1230, %v1237
    %v1246 = vadd.f32 %v1244, %v1245
    %v1247 = vtanh.pop %v1246
    %v1248 = vmul.f32 %v1243, %v1247
    %1249 = vmatprep.subr.mxu0 %v336
    %1250 = vmatpush1.msra.mxu0 %v335
    %1251 = vmatprep.subr.mxu0 %v340
    %1252 = vmatpush1.msra.mxu0 %v339
    %1253 = vmatprep.subr.mxu0 %v344
    %1254 = vmatpush1.msra.mxu0 %v343
    %1255 = vmatprep.subr.mxu0 %v348
    %1256 = vmatpush1.msra.mxu0 %v347
    %1257 = vmatprep.subr.mxu0 %v352
    %1258 = vmatpush1.msra.mxu0 %v351
    %1259 = vmatprep.subr.mxu0 %v356
    %1260 = vmatpush1.msra.mxu0 %v355
    %1261 = vmatprep.subr.mxu0 %v360
    %1262 = vmatpush1.msra.mxu0 %v359
    %1263 = vmatprep.subr.mxu0 %v364
    %1264 = vmatpush1.msra.mxu0 %v363
    %1265 = vmatprep.subr.mxu0 %v368
    %1266 = vmatpush1.msra.mxu0 %v367
    %1267 = vmatprep.subr.mxu0 %v372
    %1268 = vmatpush1.msra.mxu0 %v371
    %1269 = vmatprep.subr.mxu0 %v376
    %1270 = vmatpush1.msra.mxu0 %v375
    %1271 = vmatprep.subr.mxu0 %v380
    %1272 = vmatpush1.msra.mxu0 %v379
    %1273 = vmatprep.subr.mxu0 %v384
    %1274 = vmatpush1.msra.mxu0 %v383
    %1275 = vmatprep.subr.mxu0 %v388
    %1276 = vmatpush1.msra.mxu0 %v387
    %1277 = vmatprep.subr.mxu0 %v392
    %1278 = vmatpush1.msra.mxu0 %v391
    %1279 = vmatprep.subr.mxu0 %v396
    %1280 = vmatpush1.msra.mxu0 %v395
    %1281 = vmatprep.subr.mxu0 0.0
    %1282 = vmatpush1.msra.mxu0 0.0
    %1283 = vmatprep.subr.mxu0 0.0
    %1284 = vmatpush1.msra.mxu0 0.0
    %1285 = vmatprep.subr.mxu0 0.0
    %1286 = vmatpush1.msra.mxu0 0.0
    %1287 = vmatprep.subr.mxu0 0.0
    %1288 = vmatpush1.msra.mxu0 0.0
    %1289 = vmatprep.subr.mxu0 0.0
    %1290 = vmatpush1.msra.mxu0 0.0
    %1291 = vmatprep.subr.mxu0 0.0
    %1292 = vmatpush1.msra.mxu0 0.0
    %1293 = vmatprep.subr.mxu0 0.0
    %1294 = vmatpush1.msra.mxu0 0.0
    %1295 = vmatprep.subr.mxu0 0.0
    %1296 = vmatpush1.msra.mxu0 0.0
    %1297 = vmatprep.subr.mxu0 0.0
    %1298 = vmatpush1.msra.mxu0 0.0
    %1299 = vmatprep.subr.mxu0 0.0
    %1300 = vmatpush1.msra.mxu0 0.0
    %1301 = vmatprep.subr.mxu0 0.0
    %1302 = vmatpush1.msra.mxu0 0.0
    %1303 = vmatprep.subr.mxu0 0.0
    %1304 = vmatpush1.msra.mxu0 0.0
    %1305 = vmatprep.subr.mxu0 0.0
    %1306 = vmatpush1.msra.mxu0 0.0
    %1307 = vmatprep.subr.mxu0 0.0
    %1308 = vmatpush1.msra.mxu0 0.0
    %1309 = vmatprep.subr.mxu0 0.0
    %1310 = vmatpush1.msra.mxu0 0.0
    %1311 = vmatprep.subr.mxu0 0.0
    %1312 = vmatpush1.msra.mxu0 0.0
    %1313 = vmatprep.mubr.f32.mxu0 0.0
    %1314 = vmatmul.mubr.f32.gmra.mrb[0].mxu0 %v1248
    %v1315 = vpop.f32.mrb[0].mxu0
    %v1316 = vadd.f32 0.0, %v1315
    %v1317 = vpop.f32.mrb[0].mxu0
    %v1318 = vadd.f32 0.0, %v1317
    %1319 = vdwg.mxu0
    %1320 = vmatprep.subr.mxu0 %v338
    %1321 = vmatpush1.msra.mxu0 %v337
    %1322 = vmatprep.subr.mxu0 %v342
    %1323 = vmatpush1.msra.mxu0 %v341
    %1324 = vmatprep.subr.mxu0 %v346
    %1325 = vmatpush1.msra.mxu0 %v345
    %1326 = vmatprep.subr.mxu0 %v350
    %1327 = vmatpush1.msra.mxu0 %v349
    %1328 = vmatprep.subr.mxu0 %v354
    %1329 = vmatpush1.msra.mxu0 %v353
    %1330 = vmatprep.subr.mxu0 %v358
    %1331 = vmatpush1.msra.mxu0 %v357
    %1332 = vmatprep.subr.mxu0 %v362
    %1333 = vmatpush1.msra.mxu0 %v361
    %1334 = vmatprep.subr.mxu0 %v366
    %1335 = vmatpush1.msra.mxu0 %v365
    %1336 = vmatprep.subr.mxu0 %v370
    %1337 = vmatpush1.msra.mxu0 %v369
    %1338 = vmatprep.subr.mxu0 %v374
    %1339 = vmatpush1.msra.mxu0 %v373
    %1340 = vmatprep.subr.mxu0 %v378
    %1341 = vmatpush1.msra.mxu0 %v377
    %1342 = vmatprep.subr.mxu0 %v382
    %1343 = vmatpush1.msra.mxu0 %v381
    %1344 = vmatprep.subr.mxu0 %v386
    %1345 = vmatpush1.msra.mxu0 %v385
    %1346 = vmatprep.subr.mxu0 %v390
    %1347 = vmatpush1.msra.mxu0 %v389
    %1348 = vmatprep.subr.mxu0 %v394
    %1349 = vmatpush1.msra.mxu0 %v393
    %1350 = vmatprep.subr.mxu0 %v398
    %1351 = vmatpush1.msra.mxu0 %v397
    %1352 = vmatprep.subr.mxu0 0.0
    %1353 = vmatpush1.msra.mxu0 0.0
    %1354 = vmatprep.subr.mxu0 0.0
    %1355 = vmatpush1.msra.mxu0 0.0
    %1356 = vmatprep.subr.mxu0 0.0
    %1357 = vmatpush1.msra.mxu0 0.0
    %1358 = vmatprep.subr.mxu0 0.0
    %1359 = vmatpush1.msra.mxu0 0.0
    %1360 = vmatprep.subr.mxu0 0.0
    %1361 = vmatpush1.msra.mxu0 0.0
    %1362 = vmatprep.subr.mxu0 0.0
    %1363 = vmatpush1.msra.mxu0 0.0
    %1364 = vmatprep.subr.mxu0 0.0
    %1365 = vmatpush1.msra.mxu0 0.0
    %1366 = vmatprep.subr.mxu0 0.0
    %1367 = vmatpush1.msra.mxu0 0.0
    %1368 = vmatprep.subr.mxu0 0.0
    %1369 = vmatpush1.msra.mxu0 0.0
    %1370 = vmatprep.subr.mxu0 0.0
    %1371 = vmatpush1.msra.mxu0 0.0
    %1372 = vmatprep.subr.mxu0 0.0
    %1373 = vmatpush1.msra.mxu0 0.0
    %1374 = vmatprep.subr.mxu0 0.0
    %1375 = vmatpush1.msra.mxu0 0.0
    %1376 = vmatprep.subr.mxu0 0.0
    %1377 = vmatpush1.msra.mxu0 0.0
    %1378 = vmatprep.subr.mxu0 0.0
    %1379 = vmatpush1.msra.mxu0 0.0
    %1380 = vmatprep.subr.mxu0 0.0
    %1381 = vmatpush1.msra.mxu0 0.0
    %1382 = vmatprep.subr.mxu0 0.0
    %1383 = vmatpush1.msra.mxu0 0.0
    %1384 = vmatprep.mubr.f32.mxu0 0.0
    %1385 = vmatmul.mubr.f32.gmra.mrb[0].mxu0 %v1248
    %v1386 = vpop.f32.mrb[0].mxu0
    %v1387 = vadd.f32 0.0, %v1386
    %v1388 = vpop.f32.mrb[0].mxu0
    %v1389 = vadd.f32 0.0, %v1388
    %1390 = vdwg.mxu0
    %v1391 = vadd.f32 %v206, %v1316
    %v1392 = vadd.f32 %v208, %v1318
    %v1393 = vadd.f32 %v319, %v1387
    %v1394 = vadd.f32 %v321, %v1389
    %v1395 = vxor.u32 %v1391, 2147483648
    %v1396 = vmul.f32 %v1395, 1.442695
    %v1397 = vpow.pop %v1396
    %v1398 = vadd.f32 %v1397, 1.0
    %v1399 = vrcp.pop %v1398
    %v1400 = vmul.f32 1.0, %v1399
    %v1401 = vxor.u32 %v1392, 2147483648
    %v1402 = vmul.f32 %v1401, 1.442695
    %v1403 = vpow.pop %v1402
    %v1404 = vadd.f32 %v1403, 1.0
    %v1405 = vrcp.pop %v1404
    %v1406 = vmul.f32 1.0, %v1405
    %v1407 = vtanh.pop %v1393
    %v1408 = vxor.u32 %v1394, 2147483648
    %v1409 = vmul.f32 %v1408, 1.442695
    %v1410 = vpow.pop %v1409
    %v1411 = vadd.f32 %v1410, 1.0
    %v1412 = vrcp.pop %v1411
    %v1413 = vmul.f32 1.0, %v1412
    %v1414 = vmul.f32 %v1406, %v1246
    %v1415 = vmul.f32 %v1400, %v1407
    %v1416 = vadd.f32 %v1414, %v1415
    %v1417 = vtanh.pop %v1416
    %v1418 = vmul.f32 %v1413, %v1417
    %1419 = vmatprep.subr.mxu0 %v336
    %1420 = vmatpush1.msra.mxu0 %v335
    %1421 = vmatprep.subr.mxu0 %v340
    %1422 = vmatpush1.msra.mxu0 %v339
    %1423 = vmatprep.subr.mxu0 %v344
    %1424 = vmatpush1.msra.mxu0 %v343
    %1425 = vmatprep.subr.mxu0 %v348
    %1426 = vmatpush1.msra.mxu0 %v347
    %1427 = vmatprep.subr.mxu0 %v352
    %1428 = vmatpush1.msra.mxu0 %v351
    %1429 = vmatprep.subr.mxu0 %v356
    %1430 = vmatpush1.msra.mxu0 %v355
    %1431 = vmatprep.subr.mxu0 %v360
    %1432 = vmatpush1.msra.mxu0 %v359
    %1433 = vmatprep.subr.mxu0 %v364
    %1434 = vmatpush1.msra.mxu0 %v363
    %1435 = vmatprep.subr.mxu0 %v368
    %1436 = vmatpush1.msra.mxu0 %v367
    %1437 = vmatprep.subr.mxu0 %v372
    %1438 = vmatpush1.msra.mxu0 %v371
    %1439 = vmatprep.subr.mxu0 %v376
    %1440 = vmatpush1.msra.mxu0 %v375
    %1441 = vmatprep.subr.mxu0 %v380
    %1442 = vmatpush1.msra.mxu0 %v379
    %1443 = vmatprep.subr.mxu0 %v384
    %1444 = vmatpush1.msra.mxu0 %v383
    %1445 = vmatprep.subr.mxu0 %v388
    %1446 = vmatpush1.msra.mxu0 %v387
    %1447 = vmatprep.subr.mxu0 %v392
    %1448 = vmatpush1.msra.mxu0 %v391
    %1449 = vmatprep.subr.mxu0 %v396
    %1450 = vmatpush1.msra.mxu0 %v395
    %1451 = vmatprep.subr.mxu0 0.0
    %1452 = vmatpush1.msra.mxu0 0.0
    %1453 = vmatprep.subr.mxu0 0.0
    %1454 = vmatpush1.msra.mxu0 0.0
    %1455 = vmatprep.subr.mxu0 0.0
    %1456 = vmatpush1.msra.mxu0 0.0
    %1457 = vmatprep.subr.mxu0 0.0
    %1458 = vmatpush1.msra.mxu0 0.0
    %1459 = vmatprep.subr.mxu0 0.0
    %1460 = vmatpush1.msra.mxu0 0.0
    %1461 = vmatprep.subr.mxu0 0.0
    %1462 = vmatpush1.msra.mxu0 0.0
    %1463 = vmatprep.subr.mxu0 0.0
    %1464 = vmatpush1.msra.mxu0 0.0
    %1465 = vmatprep.subr.mxu0 0.0
    %1466 = vmatpush1.msra.mxu0 0.0
    %1467 = vmatprep.subr.mxu0 0.0
    %1468 = vmatpush1.msra.mxu0 0.0
    %1469 = vmatprep.subr.mxu0 0.0
    %1470 = vmatpush1.msra.mxu0 0.0
    %1471 = vmatprep.subr.mxu0 0.0
    %1472 = vmatpush1.msra.mxu0 0.0
    %1473 = vmatprep.subr.mxu0 0.0
    %1474 = vmatpush1.msra.mxu0 0.0
    %1475 = vmatprep.subr.mxu0 0.0
    %1476 = vmatpush1.msra.mxu0 0.0
    %1477 = vmatprep.subr.mxu0 0.0
    %1478 = vmatpush1.msra.mxu0 0.0
    %1479 = vmatprep.subr.mxu0 0.0
    %1480 = vmatpush1.msra.mxu0 0.0
    %1481 = vmatprep.subr.mxu0 0.0
    %1482 = vmatpush1.msra.mxu0 0.0
    %1483 = vmatprep.mubr.f32.mxu0 0.0
    %1484 = vmatmul.mubr.f32.gmra.mrb[0].mxu0 %v1418
    %v1485 = vpop.f32.mrb[0].mxu0
    %v1486 = vadd.f32 0.0, %v1485
    %v1487 = vpop.f32.mrb[0].mxu0
    %v1488 = vadd.f32 0.0, %v1487
    %1489 = vdwg.mxu0
    %1490 = vmatprep.subr.mxu0 %v338
    %1491 = vmatpush1.msra.mxu0 %v337
    %1492 = vmatprep.subr.mxu0 %v342
    %1493 = vmatpush1.msra.mxu0 %v341
    %1494 = vmatprep.subr.mxu0 %v346
    %1495 = vmatpush1.msra.mxu0 %v345
    %1496 = vmatprep.subr.mxu0 %v350
    %1497 = vmatpush1.msra.mxu0 %v349
    %1498 = vmatprep.subr.mxu0 %v354
    %1499 = vmatpush1.msra.mxu0 %v353
    %1500 = vmatprep.subr.mxu0 %v358
    %1501 = vmatpush1.msra.mxu0 %v357
    %1502 = vmatprep.subr.mxu0 %v362
    %1503 = vmatpush1.msra.mxu0 %v361
    %1504 = vmatprep.subr.mxu0 %v366
    %1505 = vmatpush1.msra.mxu0 %v365
    %1506 = vmatprep.subr.mxu0 %v370
    %1507 = vmatpush1.msra.mxu0 %v369
    %1508 = vmatprep.subr.mxu0 %v374
    %1509 = vmatpush1.msra.mxu0 %v373
    %1510 = vmatprep.subr.mxu0 %v378
    %1511 = vmatpush1.msra.mxu0 %v377
    %1512 = vmatprep.subr.mxu0 %v382
    %1513 = vmatpush1.msra.mxu0 %v381
    %1514 = vmatprep.subr.mxu0 %v386
    %1515 = vmatpush1.msra.mxu0 %v385
    %1516 = vmatprep.subr.mxu0 %v390
    %1517 = vmatpush1.msra.mxu0 %v389
    %1518 = vmatprep.subr.mxu0 %v394
    %1519 = vmatpush1.msra.mxu0 %v393
    %1520 = vmatprep.subr.mxu0 %v398
    %1521 = vmatpush1.msra.mxu0 %v397
    %1522 = vmatprep.subr.mxu0 0.0
    %1523 = vmatpush1.msra.mxu0 0.0
    %1524 = vmatprep.subr.mxu0 0.0
    %1525 = vmatpush1.msra.mxu0 0.0
    %1526 = vmatprep.subr.mxu0 0.0
    %1527 = vmatpush1.msra.mxu0 0.0
    %1528 = vmatprep.subr.mxu0 0.0
    %1529 = vmatpush1.msra.mxu0 0.0
    %1530 = vmatprep.subr.mxu0 0.0
    %1531 = vmatpush1.msra.mxu0 0.0
    %1532 = vmatprep.subr.mxu0 0.0
    %1533 = vmatpush1.msra.mxu0 0.0
    %1534 = vmatprep.subr.mxu0 0.0
    %1535 = vmatpush1.msra.mxu0 0.0
    %1536 = vmatprep.subr.mxu0 0.0
    %1537 = vmatpush1.msra.mxu0 0.0
    %1538 = vmatprep.subr.mxu0 0.0
    %1539 = vmatpush1.msra.mxu0 0.0
    %1540 = vmatprep.subr.mxu0 0.0
    %1541 = vmatpush1.msra.mxu0 0.0
    %1542 = vmatprep.subr.mxu0 0.0
    %1543 = vmatpush1.msra.mxu0 0.0
    %1544 = vmatprep.subr.mxu0 0.0
    %1545 = vmatpush1.msra.mxu0 0.0
    %1546 = vmatprep.subr.mxu0 0.0
    %1547 = vmatpush1.msra.mxu0 0.0
    %1548 = vmatprep.subr.mxu0 0.0
    %1549 = vmatpush1.msra.mxu0 0.0
    %1550 = vmatprep.subr.mxu0 0.0
    %1551 = vmatpush1.msra.mxu0 0.0
    %1552 = vmatprep.subr.mxu0 0.0
    %1553 = vmatpush1.msra.mxu0 0.0
    %1554 = vmatprep.mubr.f32.mxu0 0.0
    %1555 = vmatmul.mubr.f32.gmra.mrb[0].mxu0 %v1418
    %v1556 = vpop.f32.mrb[0].mxu0
    %v1557 = vadd.f32 0.0, %v1556
    %v1558 = vpop.f32.mrb[0].mxu0
    %v1559 = vadd.f32 0.0, %v1558
    %1560 = vdwg.mxu0
    %v1561 = vadd.f32 %v212, %v1486
    %v1562 = vadd.f32 %v214, %v1488
    %v1563 = vadd.f32 %v325, %v1557
    %v1564 = vadd.f32 %v327, %v1559
    %v1565 = vxor.u32 %v1561, 2147483648
    %v1566 = vmul.f32 %v1565, 1.442695
    %v1567 = vpow.pop %v1566
    %v1568 = vadd.f32 %v1567, 1.0
    %v1569 = vrcp.pop %v1568
    %v1570 = vmul.f32 1.0, %v1569
    %v1571 = vxor.u32 %v1562, 2147483648
    %v1572 = vmul.f32 %v1571, 1.442695
    %v1573 = vpow.pop %v1572
    %v1574 = vadd.f32 %v1573, 1.0
    %v1575 = vrcp.pop %v1574
    %v1576 = vmul.f32 1.0, %v1575
    %v1577 = vtanh.pop %v1563
    %v1578 = vxor.u32 %v1564, 2147483648
    %v1579 = vmul.f32 %v1578, 1.442695
    %v1580 = vpow.pop %v1579
    %v1581 = vadd.f32 %v1580, 1.0
    %v1582 = vrcp.pop %v1581
    %v1583 = vmul.f32 1.0, %v1582
    %v1584 = vmul.f32 %v1576, %v1416
    %v1585 = vmul.f32 %v1570, %v1577
    %v1586 = vadd.f32 %v1584, %v1585
    %v1587 = vtanh.pop %v1586
    %v1588 = vmul.f32 %v1583, %v1587
    %1589 = vmatprep.subr.mxu0 %v336
    %1590 = vmatpush1.msra.mxu0 %v335
    %1591 = vmatprep.subr.mxu0 %v340
    %1592 = vmatpush1.msra.mxu0 %v339
    %1593 = vmatprep.subr.mxu0 %v344
    %1594 = vmatpush1.msra.mxu0 %v343
    %1595 = vmatprep.subr.mxu0 %v348
    %1596 = vmatpush1.msra.mxu0 %v347
    %1597 = vmatprep.subr.mxu0 %v352
    %1598 = vmatpush1.msra.mxu0 %v351
    %1599 = vmatprep.subr.mxu0 %v356
    %1600 = vmatpush1.msra.mxu0 %v355
    %1601 = vmatprep.subr.mxu0 %v360
    %1602 = vmatpush1.msra.mxu0 %v359
    %1603 = vmatprep.subr.mxu0 %v364
    %1604 = vmatpush1.msra.mxu0 %v363
    %1605 = vmatprep.subr.mxu0 %v368
    %1606 = vmatpush1.msra.mxu0 %v367
    %1607 = vmatprep.subr.mxu0 %v372
    %1608 = vmatpush1.msra.mxu0 %v371
    %1609 = vmatprep.subr.mxu0 %v376
    %1610 = vmatpush1.msra.mxu0 %v375
    %1611 = vmatprep.subr.mxu0 %v380
    %1612 = vmatpush1.msra.mxu0 %v379
    %1613 = vmatprep.subr.mxu0 %v384
    %1614 = vmatpush1.msra.mxu0 %v383
    %1615 = vmatprep.subr.mxu0 %v388
    %1616 = vmatpush1.msra.mxu0 %v387
    %1617 = vmatprep.subr.mxu0 %v392
    %1618 = vmatpush1.msra.mxu0 %v391
    %1619 = vmatprep.subr.mxu0 %v396
    %1620 = vmatpush1.msra.mxu0 %v395
    %1621 = vmatprep.subr.mxu0 0.0
    %1622 = vmatpush1.msra.mxu0 0.0
    %1623 = vmatprep.subr.mxu0 0.0
    %1624 = vmatpush1.msra.mxu0 0.0
    %1625 = vmatprep.subr.mxu0 0.0
    %1626 = vmatpush1.msra.mxu0 0.0
    %1627 = vmatprep.subr.mxu0 0.0
    %1628 = vmatpush1.msra.mxu0 0.0
    %1629 = vmatprep.subr.mxu0 0.0
    %1630 = vmatpush1.msra.mxu0 0.0
    %1631 = vmatprep.subr.mxu0 0.0
    %1632 = vmatpush1.msra.mxu0 0.0
    %1633 = vmatprep.subr.mxu0 0.0
    %1634 = vmatpush1.msra.mxu0 0.0
    %1635 = vmatprep.subr.mxu0 0.0
    %1636 = vmatpush1.msra.mxu0 0.0
    %1637 = vmatprep.subr.mxu0 0.0
    %1638 = vmatpush1.msra.mxu0 0.0
    %1639 = vmatprep.subr.mxu0 0.0
    %1640 = vmatpush1.msra.mxu0 0.0
    %1641 = vmatprep.subr.mxu0 0.0
    %1642 = vmatpush1.msra.mxu0 0.0
    %1643 = vmatprep.subr.mxu0 0.0
    %1644 = vmatpush1.msra.mxu0 0.0
    %1645 = vmatprep.subr.mxu0 0.0
    %1646 = vmatpush1.msra.mxu0 0.0
    %1647 = vmatprep.subr.mxu0 0.0
    %1648 = vmatpush1.msra.mxu0 0.0
    %1649 = vmatprep.subr.mxu0 0.0
    %1650 = vmatpush1.msra.mxu0 0.0
    %1651 = vmatprep.subr.mxu0 0.0
    %1652 = vmatpush1.msra.mxu0 0.0
    %1653 = vmatprep.mubr.f32.mxu0 0.0
    %1654 = vmatmul.mubr.f32.gmra.mrb[0].mxu0 %v1588
    %v1655 = vpop.f32.mrb[0].mxu0
    %v1656 = vadd.f32 0.0, %v1655
    %v1657 = vpop.f32.mrb[0].mxu0
    %v1658 = vadd.f32 0.0, %v1657
    %1659 = vdwg.mxu0
    %1660 = vmatprep.subr.mxu0 %v338
    %1661 = vmatpush1.msra.mxu0 %v337
    %1662 = vmatprep.subr.mxu0 %v342
    %1663 = vmatpush1.msra.mxu0 %v341
    %1664 = vmatprep.subr.mxu0 %v346
    %1665 = vmatpush1.msra.mxu0 %v345
    %1666 = vmatprep.subr.mxu0 %v350
    %1667 = vmatpush1.msra.mxu0 %v349
    %1668 = vmatprep.subr.mxu0 %v354
    %1669 = vmatpush1.msra.mxu0 %v353
    %1670 = vmatprep.subr.mxu0 %v358
    %1671 = vmatpush1.msra.mxu0 %v357
    %1672 = vmatprep.subr.mxu0 %v362
    %1673 = vmatpush1.msra.mxu0 %v361
    %1674 = vmatprep.subr.mxu0 %v366
    %1675 = vmatpush1.msra.mxu0 %v365
    %1676 = vmatprep.subr.mxu0 %v370
    %1677 = vmatpush1.msra.mxu0 %v369
    %1678 = vmatprep.subr.mxu0 %v374
    %1679 = vmatpush1.msra.mxu0 %v373
    %1680 = vmatprep.subr.mxu0 %v378
    %1681 = vmatpush1.msra.mxu0 %v377
    %1682 = vmatprep.subr.mxu0 %v382
    %1683 = vmatpush1.msra.mxu0 %v381
    %1684 = vmatprep.subr.mxu0 %v386
    %1685 = vmatpush1.msra.mxu0 %v385
    %1686 = vmatprep.subr.mxu0 %v390
    %1687 = vmatpush1.msra.mxu0 %v389
    %1688 = vmatprep.subr.mxu0 %v394
    %1689 = vmatpush1.msra.mxu0 %v393
    %1690 = vmatprep.subr.mxu0 %v398
    %1691 = vmatpush1.msra.mxu0 %v397
    %1692 = vmatprep.subr.mxu0 0.0
    %1693 = vmatpush1.msra.mxu0 0.0
    %1694 = vmatprep.subr.mxu0 0.0
    %1695 = vmatpush1.msra.mxu0 0.0
    %1696 = vmatprep.subr.mxu0 0.0
    %1697 = vmatpush1.msra.mxu0 0.0
    %1698 = vmatprep.subr.mxu0 0.0
    %1699 = vmatpush1.msra.mxu0 0.0
    %1700 = vmatprep.subr.mxu0 0.0
    %1701 = vmatpush1.msra.mxu0 0.0
    %1702 = vmatprep.subr.mxu0 0.0
    %1703 = vmatpush1.msra.mxu0 0.0
    %1704 = vmatprep.subr.mxu0 0.0
    %1705 = vmatpush1.msra.mxu0 0.0
    %1706 = vmatprep.subr.mxu0 0.0
    %1707 = vmatpush1.msra.mxu0 0.0
    %1708 = vmatprep.subr.mxu0 0.0
    %1709 = vmatpush1.msra.mxu0 0.0
    %1710 = vmatprep.subr.mxu0 0.0
    %1711 = vmatpush1.msra.mxu0 0.0
    %1712 = vmatprep.subr.mxu0 0.0
    %1713 = vmatpush1.msra.mxu0 0.0
    %1714 = vmatprep.subr.mxu0 0.0
    %1715 = vmatpush1.msra.mxu0 0.0
    %1716 = vmatprep.subr.mxu0 0.0
    %1717 = vmatpush1.msra.mxu0 0.0
    %1718 = vmatprep.subr.mxu0 0.0
    %1719 = vmatpush1.msra.mxu0 0.0
    %1720 = vmatprep.subr.mxu0 0.0
    %1721 = vmatpush1.msra.mxu0 0.0
    %1722 = vmatprep.subr.mxu0 0.0
    %1723 = vmatpush1.msra.mxu0 0.0
    %1724 = vmatprep.mubr.f32.mxu0 0.0
    %1725 = vmatmul.mubr.f32.gmra.mrb[0].mxu0 %v1588
    %v1726 = vpop.f32.mrb[0].mxu0
    %v1727 = vadd.f32 0.0, %v1726
    %v1728 = vpop.f32.mrb[0].mxu0
    %v1729 = vadd.f32 0.0, %v1728
    %1730 = vdwg.mxu0
    %v1731 = vadd.f32 %v218, %v1656
    %v1732 = vadd.f32 %v220, %v1658
    %v1733 = vadd.f32 %v331, %v1727
    %v1734 = vadd.f32 %v333, %v1729
    %v1735 = vxor.u32 %v1731, 2147483648
    %v1736 = vmul.f32 %v1735, 1.442695
    %v1737 = vpow.pop %v1736
    %v1738 = vadd.f32 %v1737, 1.0
    %v1739 = vrcp.pop %v1738
    %v1740 = vmul.f32 1.0, %v1739
    %v1741 = vxor.u32 %v1732, 2147483648
    %v1742 = vmul.f32 %v1741, 1.442695
    %v1743 = vpow.pop %v1742
    %v1744 = vadd.f32 %v1743, 1.0
    %v1745 = vrcp.pop %v1744
    %v1746 = vmul.f32 1.0, %v1745
    %v1747 = vtanh.pop %v1733
    %v1748 = vxor.u32 %v1734, 2147483648
    %v1749 = vmul.f32 %v1748, 1.442695
    %v1750 = vpow.pop %v1749
    %v1751 = vadd.f32 %v1750, 1.0
    %v1752 = vrcp.pop %v1751
    %v1753 = vmul.f32 1.0, %v1752
    %v1754 = vmul.f32 %v1746, %v1586
    %v1755 = vmul.f32 %v1740, %v1747
    %v1756 = vadd.f32 %v1754, %v1755
    %v1757 = vtanh.pop %v1756
    %v1758 = vmul.f32 %v1753, %v1757
    %v1759 = vld [vmem:[%s4] sm:$0x1]
    %v1761 = vlaneseq
    %v1762 = vshrl.u32 %v1761, 7
    %v1763 = vsub.s32 0, %v1762
    %v1764 = vrot.slane %v1759, %v1763
    %v1766 = vmul.f32 %v1758, %v1764
    %1767 = vadd.xlane.f32.xlu0 %v1766
    %v1768 = vpop.xlane.xlu0 %1767
    %v1769 = vld [vmem:[#allocation2] sm:$0x1]
    %v1771 = vlaneseq
    %v1772 = vshrl.u32 %v1771, 7
    %v1773 = vsub.s32 0, %v1772
    %v1774 = vrot.slane %v1769, %v1773
    %v1776 = vadd.f32 %v1768, %v1774
    %1778 = vset.pattern.permute.xlu0 0
    %1779 = vperm.xlu0 %1778, %v1776
    %v1780 = vpop.permute.xlu0 %1779
    %1782 = vst [vmem:[%s6] sm:$0xff] %v1780
    // Predicated region
    $region30: #{lstm_model_forward.1} parent=1 // pred_check
      _
    $region31: #{lstm_model_forward.1} parent=1 // pred_check_branch
      %1784 = sbr.rel (0) target = $region33
    $region32: #{lstm_model_forward.1} parent=1 // pred_region
      _
    $region33: #{lstm_model_forward.1} parent=1 // pred_fallthru
      _
    // Predicated region
    $region34: #{lstm_model_forward.1} parent=1 // pred_check
      _
    $region35: #{lstm_model_forward.1} parent=1 // pred_check_branch
      %1786 = sbr.rel (0) target = $region37
    $region36: #{lstm_model_forward.1} parent=1 // pred_region
      _
    $region37: #{lstm_model_forward.1} parent=1 // pred_fallthru
      _
    %1787 = vsyncpa [#allocation4], 1

</llo_original>
